<compile_context>
chip_gen: v7x
topology: tpu7x:2x2x1
jax: 0.10.0
libtpu: 0.0.40
codegen_flags: <defaults>
</compile_context>

<pallas_src>
import functools

import numpy as np
import jax
import jax.numpy as jnp
from jax.experimental import pallas as pl
from jax.experimental.pallas import tpu as pltpu

# ---------------------------------------------------------------------------
# Static network geometry (input_shape = (4, 32, 32)).
# ---------------------------------------------------------------------------
C_IN, H_IN, W_IN = 4, 32, 32
K1, S1, C1 = 8, 4, 16            # conv1: kernel 8, stride 4, 16 out channels
K2, S2, C2 = 4, 2, 32            # conv2: kernel 4, stride 2, 32 out channels
OH1 = (H_IN - K1) // S1 + 1      # 7
OH2 = (OH1 - K2) // S2 + 1       # 2
N_POS2 = OH2 * OH2               # 4   conv2 output positions
N_TAPS = K2 * K2                 # 16  conv2 kernel taps (kh2, kw2)
KPATCH1 = C_IN * K1 * K1         # 256 conv1 patch length (c, kh1, kw1)
N_DUP = N_TAPS * N_POS2          # 64  duplicated conv1-patch rows per image
CONV_OUT = C2 * N_POS2           # 128 flatten size feeding fc
FC = 512
NA_PAD = 8                       # dueling-head columns: [V | A... | zero pad]

# Row gather index: for tap (kh2, kw2) and conv2 position (i, j), the conv1
# output position is (S2*i + kh2, S2*j + kw2), flattened row-major over 7x7.
_POS_IDX = np.array(
    [(S2 * i + kh2) * OH1 + (S2 * j + kw2)
     for kh2 in range(K2) for kw2 in range(K2)
     for i in range(OH2) for j in range(OH2)], dtype=np.int32)       # (64,)


# ---------------------------------------------------------------------------
# Fused Pallas kernel (one grid step = nb images, folded into matmul rows)
# ---------------------------------------------------------------------------
def _fused_forward_kernel(alphas_ref, p1_ref, w1_ref, b1_ref, w2_ref, b2_ref,
                          wfc_ref, bfc_ref, wva_ref, bva_ref, q_ref, *,
                          n_actions):
    nb = q_ref.shape[0]                 # images folded into this grid step
    rows_per_tap = N_POS2 * nb          # contiguous slab (8 rows when nb = 2)

    a1 = alphas_ref[0, 0]
    a2 = alphas_ref[0, 1]
    a3 = alphas_ref[0, 2]

    # conv1 + PReLU: one matmul over all duplicated patch rows of the chunk.
    # Row r = tap*(4*nb) + pos*nb + b holds the conv1 receptive field feeding
    # conv2 tap (kh2, kw2) at conv2 position pos for image b.
    y1 = jnp.dot(p1_ref[...], w1_ref[...],
                 preferred_element_type=jnp.float32) + b1_ref[...]
    y1 = jnp.where(y1 >= 0.0, y1, a1 * y1)               # (64*nb, 16)

    # conv2 + PReLU: 16 (kh2, kw2) taps; tap kk uses a contiguous, sublane-
    # aligned (4*nb, 16) slab of y1 and the matching (16, 32) slab of w2.
    acc2 = jnp.zeros((rows_per_tap, C2), jnp.float32)
    for kk in range(N_TAPS):
        acc2 = acc2 + jnp.dot(y1[kk * rows_per_tap:(kk + 1) * rows_per_tap, :],
                              w2_ref[kk * C1:(kk + 1) * C1, :],
                              preferred_element_type=jnp.float32)
    y2 = acc2 + b2_ref[...]
    y2 = jnp.where(y2 >= 0.0, y2, a2 * y2)                # (4*nb, 32), rows (pos, b)

    # Flatten (NCHW order folded into the pre-permuted fc weight) + fc +
    # PReLU.  Per-position dots run at M = nb rows (no M=1 dots, no reshape).
    acc3 = jnp.zeros((nb, FC), jnp.float32)
    for p in range(N_POS2):
        acc3 = acc3 + jnp.dot(y2[p * nb:(p + 1) * nb, :],
                              wfc_ref[p * C2:(p + 1) * C2, :],
                              preferred_element_type=jnp.float32)
    h = acc3 + bfc_ref[...]
    h = jnp.where(h >= 0.0, h, a3 * h)                    # (nb, 512)

    # Dueling head: one matmul against [V | A | zero-pad] columns.
    va = jnp.dot(h, wva_ref[...],
                 preferred_element_type=jnp.float32) + bva_ref[...]   # (nb, 8)
    v = va[:, 0:1]                                        # V + bv
    a_sum = jnp.sum(va, axis=1, keepdims=True) - v        # pad columns are 0
    a_mean = a_sum * (1.0 / n_actions)
    # Lanes 1..n_actions hold Q; lanes 0 and NA_PAD-1 are don't-care.
    q_ref[...] = va + v - a_mean


# ---------------------------------------------------------------------------
# Wrapper-side layout plumbing (one conv-patches op + one gather, no compute)
# ---------------------------------------------------------------------------
def _conv1_dup_patches(x, grid_n):
    """x: (N, 4, 32, 32) -> (grid_n, 64 * (N // grid_n), 256).

    Duplicated conv1 patch rows ordered (tap, conv2-position, image) inside
    each grid chunk; columns are (c, kh1, kw1), matching the OIHW flatten of
    the conv1 weight."""
    n = x.shape[0]
    nb = n // grid_n
    patches = jax.lax.conv_general_dilated_patches(
        x, (K1, K1), (S1, S1), "VALID",
        dimension_numbers=("NCHW", "OIHW", "NCHW"),
        precision=jax.lax.Precision.HIGHEST)               # (n, 256, 7, 7)
    pos = jnp.transpose(patches, (0, 2, 3, 1)).reshape(n, OH1 * OH1, KPATCH1)
    dup = pos[:, _POS_IDX, :]                              # (n, 64, 256)
    dup = dup.reshape(grid_n, nb, N_DUP, KPATCH1)
    dup = jnp.transpose(dup, (0, 2, 1, 3))                 # (G, 64, nb, 256)
    return dup.reshape(grid_n, N_DUP * nb, KPATCH1)


def _num_grid_chunks(batch):
    """2-wide 'parallel' grid only on chips with 2 TensorCores (v7x); single-
    TC chips (v5e / v6e) get one grid step with the whole batch folded."""
    try:
        kind = jax.devices()[0].device_kind.lower()
    except Exception:
        kind = ""
    if ("v7" in kind) and batch >= 2 and batch % 2 == 0:
        return 2
    return 1


def forward(params, x):
    n = x.shape[0]
    n_actions = params["wa"].shape[0]
    assert n_actions <= NA_PAD - 1, "dueling head padded to 8 lanes"
    grid_n = _num_grid_chunks(n)
    assert n % grid_n == 0
    nb = n // grid_n
    rows = N_DUP * nb

    p1 = _conv1_dup_patches(x, grid_n)                     # (G, 64*nb, 256)

    # One-time weight re-orderings (layout only, no math):
    w1_t = params["w1"].reshape(C1, KPATCH1).T             # (256, 16)
    w2_t = params["w2"].transpose(2, 3, 1, 0).reshape(N_TAPS * C1, C2)  # (256, 32)
    # fc weight permuted to (conv2 position, channel) row order, absorbing
    # the NCHW flatten that sits between conv2 and fc.
    wfc_r = params["wfc"].reshape(FC, C2, N_POS2).transpose(2, 1, 0)
    wfc_r = wfc_r.reshape(CONV_OUT, FC)                    # (128, 512)
    # Dueling head fused into one (512, 8) weight: [V | A | zero pad].
    wva = jnp.concatenate(
        [params["wv"].T, params["wa"].T,
         jnp.zeros((FC, NA_PAD - 1 - n_actions), jnp.float32)], axis=1)
    bva = jnp.concatenate(
        [params["bv"], params["ba"],
         jnp.zeros((NA_PAD - 1 - n_actions,), jnp.float32)]).reshape(1, NA_PAD)

    alphas = jnp.stack([params["a1"], params["a2"], params["a3"]]).reshape(1, 3)

    flops = 2 * n * (N_DUP * KPATCH1 * C1 + N_POS2 * (N_TAPS * C1) * C2
                     + CONV_OUT * FC + FC * NA_PAD)
    bytes_accessed = 4 * (p1.size + w1_t.size + w2_t.size + wfc_r.size
                          + wva.size + C1 + C2 + FC + NA_PAD + n * NA_PAD)

    out = pl.pallas_call(
        functools.partial(_fused_forward_kernel, n_actions=n_actions),
        out_shape=jax.ShapeDtypeStruct((grid_n, nb, NA_PAD), jnp.float32),
        grid=(grid_n,),
        in_specs=[
            pl.BlockSpec((1, 3), lambda g: (0, 0),
                         memory_space=pltpu.MemorySpace.SMEM),   # PReLU alphas
            pl.BlockSpec((None, rows, KPATCH1), lambda g: (g, 0, 0)),  # patches
            pl.BlockSpec((KPATCH1, C1), lambda g: (0, 0)),       # w1
            pl.BlockSpec((1, C1), lambda g: (0, 0)),             # b1
            pl.BlockSpec((N_TAPS * C1, C2), lambda g: (0, 0)),   # w2
            pl.BlockSpec((1, C2), lambda g: (0, 0)),             # b2
            pl.BlockSpec((CONV_OUT, FC), lambda g: (0, 0)),      # wfc (permuted)
            pl.BlockSpec((1, FC), lambda g: (0, 0)),             # bfc
            pl.BlockSpec((FC, NA_PAD), lambda g: (0, 0)),        # [V|A|pad]
            pl.BlockSpec((1, NA_PAD), lambda g: (0, 0)),         # [bv|ba|0]
        ],
        out_specs=pl.BlockSpec((None, nb, NA_PAD), lambda g: (g, 0, 0)),
        compiler_params=pltpu.CompilerParams(
            dimension_semantics=("parallel",)),
        cost_estimate=pl.CostEstimate(flops=flops, transcendentals=0,
                                      bytes_accessed=bytes_accessed),
    )(alphas, p1, w1_t, params["b1"].reshape(1, C1), w2_t,
      params["b2"].reshape(1, C2), wfc_r, params["bfc"].reshape(1, FC),
      wva, bva)

    return out.reshape(n, NA_PAD)[:, 1:1 + n_actions]


# ---------------------------------------------------------------------------
# Pure-JAX reference (matches the PyTorch module; full f32 precision)
# ---------------------------------------------------------------------------
def ref_forward(params, x):
    hp = jax.lax.Precision.HIGHEST

    def prelu(v, a):
        return jnp.where(v >= 0, v, a * v)

    y = jax.lax.conv_general_dilated(
        x, params["w1"], (S1, S1), "VALID",
        dimension_numbers=("NCHW", "OIHW", "NCHW"), precision=hp)
    y = prelu(y + params["b1"][None, :, None, None], params["a1"])
    y = jax.lax.conv_general_dilated(
        y, params["w2"], (S2, S2), "VALID",
        dimension_numbers=("NCHW", "OIHW", "NCHW"), precision=hp)
    y = prelu(y + params["b2"][None, :, None, None], params["a2"])
    h = y.reshape(y.shape[0], -1)
    h = prelu(jnp.dot(h, params["wfc"].T, precision=hp) + params["bfc"],
              params["a3"])
    v = jnp.dot(h, params["wv"].T, precision=hp) + params["bv"]
    a = jnp.dot(h, params["wa"].T, precision=hp) + params["ba"]
    return v + (a - a.mean(axis=1, keepdims=True))


# ---------------------------------------------------------------------------
# Main
# ---------------------------------------------------------------------------
if __name__ == "__main__":
    # TODO(synk): DuelingDQCNN.save() is host-side file I/O, not a kernel op.
    input_shape = (C_IN, H_IN, W_IN)
    n_actions = 6
    batch = 2

    key = jax.random.PRNGKey(0)
    ks = jax.random.split(key, 11)

    def u(k, shape, fan_in):
        bound = 1.0 / np.sqrt(fan_in)
        return jax.random.uniform(k, shape, jnp.float32, -bound, bound)

    params = {
        "w1": u(ks[0], (C1, C_IN, K1, K1), C_IN * K1 * K1),
        "b1": u(ks[1], (C1,), C_IN * K1 * K1),
        "a1": jnp.float32(0.25),
        "w2": u(ks[2], (C2, C1, K2, K2), C1 * K2 * K2),
        "b2": u(ks[3], (C2,), C1 * K2 * K2),
        "a2": jnp.float32(0.25),
        "wfc": u(ks[4], (FC, CONV_OUT), CONV_OUT),
        "bfc": u(ks[5], (FC,), CONV_OUT),
        "a3": jnp.float32(0.25),
        "wv": u(ks[6], (1, FC), FC),
        "bv": u(ks[7], (1,), FC),
        "wa": u(ks[8], (n_actions, FC), FC),
        "ba": u(ks[9], (n_actions,), FC),
    }

    x = jax.random.uniform(ks[10], (batch,) + input_shape, jnp.float32)

    q = jax.jit(forward)(params, x)
    q = jax.block_until_ready(q)

    q_ref = ref_forward(params, x)
    assert q.shape == (batch, n_actions), q.shape
    max_err = float(jnp.max(jnp.abs(q - q_ref)))
    # Kernel dots use default (single-pass) MXU precision; reference is full
    # f32, so allow a bf16-level tolerance.
    assert jnp.allclose(q, q_ref, rtol=5e-3, atol=5e-3), (
        f"mismatch vs pure-JAX reference: max abs err {max_err}")

    print("KERNEL_OK")
</pallas_src>

<mosaic_0001>
module attributes {stable_mosaic.version = 11 : i64} {
  func.func @_fused_forward_kernel(%arg0: i32, %arg1: memref<1x3xf32, #tpu.memory_space<smem>>, %arg2: memref<1x128x256xf32, #tpu.memory_space<vmem>>, %arg3: memref<256x16xf32, #tpu.memory_space<vmem>>, %arg4: memref<1x16xf32, #tpu.memory_space<vmem>>, %arg5: memref<256x32xf32, #tpu.memory_space<vmem>>, %arg6: memref<1x32xf32, #tpu.memory_space<vmem>>, %arg7: memref<128x512xf32, #tpu.memory_space<vmem>>, %arg8: memref<1x512xf32, #tpu.memory_space<vmem>>, %arg9: memref<512x8xf32, #tpu.memory_space<vmem>>, %arg10: memref<1x8xf32, #tpu.memory_space<vmem>>, %arg11: memref<1x2x8xf32, #tpu.memory_space<vmem>>) attributes {dimension_semantics = [#tpu.dimension_semantics<parallel>], iteration_bounds = array<i64: 1>, scalar_prefetch = 0 : i64, scratch_operands = 0 : i64, tpu.core_type = #tpu.core_type<tc>, window_params = [{transform_indices = @transform_0, window_bounds = array<i64: 1, 3>}, {transform_indices = @transform_1, window_bounds = array<i64: 1, 128, 256>}, {pipeline_mode = #tpu.pipeline_mode<synchronous>, transform_indices = @transform_2, window_bounds = array<i64: 256, 16>}, {pipeline_mode = #tpu.pipeline_mode<synchronous>, transform_indices = @transform_3, window_bounds = array<i64: 1, 16>}, {pipeline_mode = #tpu.pipeline_mode<synchronous>, transform_indices = @transform_4, window_bounds = array<i64: 256, 32>}, {pipeline_mode = #tpu.pipeline_mode<synchronous>, transform_indices = @transform_5, window_bounds = array<i64: 1, 32>}, {pipeline_mode = #tpu.pipeline_mode<synchronous>, transform_indices = @transform_6, window_bounds = array<i64: 128, 512>}, {pipeline_mode = #tpu.pipeline_mode<synchronous>, transform_indices = @transform_7, window_bounds = array<i64: 1, 512>}, {pipeline_mode = #tpu.pipeline_mode<synchronous>, transform_indices = @transform_8, window_bounds = array<i64: 512, 8>}, {pipeline_mode = #tpu.pipeline_mode<synchronous>, transform_indices = @transform_9, window_bounds = array<i64: 1, 8>}, {transform_indices = @transform_10, window_bounds = array<i64: 1, 2, 8>}]} {
    %c0 = arith.constant 0 : index
    %c0_0 = arith.constant 0 : index
    %0 = memref.load %arg1[%c0, %c0_0] : memref<1x3xf32, #tpu.memory_space<smem>>
    %c0_1 = arith.constant 0 : index
    %c1 = arith.constant 1 : index
    %1 = memref.load %arg1[%c0_1, %c1] : memref<1x3xf32, #tpu.memory_space<smem>>
    %c0_2 = arith.constant 0 : index
    %c2 = arith.constant 2 : index
    %2 = memref.load %arg1[%c0_2, %c2] : memref<1x3xf32, #tpu.memory_space<smem>>
    %c0_3 = arith.constant 0 : index
    %c0_4 = arith.constant 0 : index
    %c0_5 = arith.constant 0 : index
    %3 = vector.load %arg2[%c0_3, %c0_4, %c0_5] : memref<1x128x256xf32, #tpu.memory_space<vmem>>, vector<1x128x256xf32>
    %4 = vector.shape_cast %3 : vector<1x128x256xf32> to vector<128x256xf32>
    %c0_6 = arith.constant 0 : index
    %c0_7 = arith.constant 0 : index
    %5 = vector.load %arg3[%c0_6, %c0_7] : memref<256x16xf32, #tpu.memory_space<vmem>>, vector<256x16xf32>
    %cst = arith.constant dense<0.000000e+00> : vector<128x16xf32>
    %6 = tpu.matmul %4, %5, %cst {dimension_numbers = #tpu.dot_dimension_numbers<[1], [0], [0], [1], [0, 0, 1, 1], [], []>} : vector<128x256xf32>, vector<256x16xf32>, vector<128x16xf32> -> vector<128x16xf32>
    %c0_8 = arith.constant 0 : index
    %c0_9 = arith.constant 0 : index
    %7 = vector.load %arg4[%c0_8, %c0_9] : memref<1x16xf32, #tpu.memory_space<vmem>>, vector<1x16xf32>
    %8 = vector.broadcast %7 : vector<1x16xf32> to vector<128x16xf32>
    %9 = arith.addf %6, %8 : vector<128x16xf32>
    %cst_10 = arith.constant 0.000000e+00 : f32
    %10 = vector.broadcast %cst_10 : f32 to vector<128x16xf32>
    %11 = arith.cmpf oge, %9, %10 : vector<128x16xf32>
    %12 = vector.broadcast %0 : f32 to vector<128x16xf32>
    %13 = arith.mulf %12, %9 : vector<128x16xf32>
    %14 = arith.select %11, %9, %13 : vector<128x16xi1>, vector<128x16xf32>
    %cst_11 = arith.constant 0.000000e+00 : f32
    %15 = vector.broadcast %cst_11 : f32 to vector<8x32xf32>
    %16 = vector.extract_strided_slice %14 {offsets = [0, 0], sizes = [8, 16], strides = [1, 1]} : vector<128x16xf32> to vector<8x16xf32>
    %c0_12 = arith.constant 0 : index
    %c0_13 = arith.constant 0 : index
    %17 = vector.load %arg5[%c0_12, %c0_13] : memref<256x32xf32, #tpu.memory_space<vmem>>, vector<16x32xf32>
    %cst_14 = arith.constant dense<0.000000e+00> : vector<8x32xf32>
    %18 = tpu.matmul %16, %17, %cst_14 {dimension_numbers = #tpu.dot_dimension_numbers<[1], [0], [0], [1], [0, 0, 1, 1], [], []>} : vector<8x16xf32>, vector<16x32xf32>, vector<8x32xf32> -> vector<8x32xf32>
    %19 = arith.addf %15, %18 : vector<8x32xf32>
    %20 = vector.extract_strided_slice %14 {offsets = [8, 0], sizes = [8, 16], strides = [1, 1]} : vector<128x16xf32> to vector<8x16xf32>
    %c16 = arith.constant 16 : index
    %c0_15 = arith.constant 0 : index
    %21 = vector.load %arg5[%c16, %c0_15] : memref<256x32xf32, #tpu.memory_space<vmem>>, vector<16x32xf32>
    %cst_16 = arith.constant dense<0.000000e+00> : vector<8x32xf32>
    %22 = tpu.matmul %20, %21, %cst_16 {dimension_numbers = #tpu.dot_dimension_numbers<[1], [0], [0], [1], [0, 0, 1, 1], [], []>} : vector<8x16xf32>, vector<16x32xf32>, vector<8x32xf32> -> vector<8x32xf32>
    %23 = arith.addf %19, %22 : vector<8x32xf32>
    %24 = vector.extract_strided_slice %14 {offsets = [16, 0], sizes = [8, 16], strides = [1, 1]} : vector<128x16xf32> to vector<8x16xf32>
    %c32 = arith.constant 32 : index
    %c0_17 = arith.constant 0 : index
    %25 = vector.load %arg5[%c32, %c0_17] : memref<256x32xf32, #tpu.memory_space<vmem>>, vector<16x32xf32>
    %cst_18 = arith.constant dense<0.000000e+00> : vector<8x32xf32>
    %26 = tpu.matmul %24, %25, %cst_18 {dimension_numbers = #tpu.dot_dimension_numbers<[1], [0], [0], [1], [0, 0, 1, 1], [], []>} : vector<8x16xf32>, vector<16x32xf32>, vector<8x32xf32> -> vector<8x32xf32>
    %27 = arith.addf %23, %26 : vector<8x32xf32>
    %28 = vector.extract_strided_slice %14 {offsets = [24, 0], sizes = [8, 16], strides = [1, 1]} : vector<128x16xf32> to vector<8x16xf32>
    %c48 = arith.constant 48 : index
    %c0_19 = arith.constant 0 : index
    %29 = vector.load %arg5[%c48, %c0_19] : memref<256x32xf32, #tpu.memory_space<vmem>>, vector<16x32xf32>
    %cst_20 = arith.constant dense<0.000000e+00> : vector<8x32xf32>
    %30 = tpu.matmul %28, %29, %cst_20 {dimension_numbers = #tpu.dot_dimension_numbers<[1], [0], [0], [1], [0, 0, 1, 1], [], []>} : vector<8x16xf32>, vector<16x32xf32>, vector<8x32xf32> -> vector<8x32xf32>
    %31 = arith.addf %27, %30 : vector<8x32xf32>
    %32 = vector.extract_strided_slice %14 {offsets = [32, 0], sizes = [8, 16], strides = [1, 1]} : vector<128x16xf32> to vector<8x16xf32>
    %c64 = arith.constant 64 : index
    %c0_21 = arith.constant 0 : index
    %33 = vector.load %arg5[%c64, %c0_21] : memref<256x32xf32, #tpu.memory_space<vmem>>, vector<16x32xf32>
    %cst_22 = arith.constant dense<0.000000e+00> : vector<8x32xf32>
    %34 = tpu.matmul %32, %33, %cst_22 {dimension_numbers = #tpu.dot_dimension_numbers<[1], [0], [0], [1], [0, 0, 1, 1], [], []>} : vector<8x16xf32>, vector<16x32xf32>, vector<8x32xf32> -> vector<8x32xf32>
    %35 = arith.addf %31, %34 : vector<8x32xf32>
    %36 = vector.extract_strided_slice %14 {offsets = [40, 0], sizes = [8, 16], strides = [1, 1]} : vector<128x16xf32> to vector<8x16xf32>
    %c80 = arith.constant 80 : index
    %c0_23 = arith.constant 0 : index
    %37 = vector.load %arg5[%c80, %c0_23] : memref<256x32xf32, #tpu.memory_space<vmem>>, vector<16x32xf32>
    %cst_24 = arith.constant dense<0.000000e+00> : vector<8x32xf32>
    %38 = tpu.matmul %36, %37, %cst_24 {dimension_numbers = #tpu.dot_dimension_numbers<[1], [0], [0], [1], [0, 0, 1, 1], [], []>} : vector<8x16xf32>, vector<16x32xf32>, vector<8x32xf32> -> vector<8x32xf32>
    %39 = arith.addf %35, %38 : vector<8x32xf32>
    %40 = vector.extract_strided_slice %14 {offsets = [48, 0], sizes = [8, 16], strides = [1, 1]} : vector<128x16xf32> to vector<8x16xf32>
    %c96 = arith.constant 96 : index
    %c0_25 = arith.constant 0 : index
    %41 = vector.load %arg5[%c96, %c0_25] : memref<256x32xf32, #tpu.memory_space<vmem>>, vector<16x32xf32>
    %cst_26 = arith.constant dense<0.000000e+00> : vector<8x32xf32>
    %42 = tpu.matmul %40, %41, %cst_26 {dimension_numbers = #tpu.dot_dimension_numbers<[1], [0], [0], [1], [0, 0, 1, 1], [], []>} : vector<8x16xf32>, vector<16x32xf32>, vector<8x32xf32> -> vector<8x32xf32>
    %43 = arith.addf %39, %42 : vector<8x32xf32>
    %44 = vector.extract_strided_slice %14 {offsets = [56, 0], sizes = [8, 16], strides = [1, 1]} : vector<128x16xf32> to vector<8x16xf32>
    %c112 = arith.constant 112 : index
    %c0_27 = arith.constant 0 : index
    %45 = vector.load %arg5[%c112, %c0_27] : memref<256x32xf32, #tpu.memory_space<vmem>>, vector<16x32xf32>
    %cst_28 = arith.constant dense<0.000000e+00> : vector<8x32xf32>
    %46 = tpu.matmul %44, %45, %cst_28 {dimension_numbers = #tpu.dot_dimension_numbers<[1], [0], [0], [1], [0, 0, 1, 1], [], []>} : vector<8x16xf32>, vector<16x32xf32>, vector<8x32xf32> -> vector<8x32xf32>
    %47 = arith.addf %43, %46 : vector<8x32xf32>
    %48 = vector.extract_strided_slice %14 {offsets = [64, 0], sizes = [8, 16], strides = [1, 1]} : vector<128x16xf32> to vector<8x16xf32>
    %c128 = arith.constant 128 : index
    %c0_29 = arith.constant 0 : index
    %49 = vector.load %arg5[%c128, %c0_29] : memref<256x32xf32, #tpu.memory_space<vmem>>, vector<16x32xf32>
    %cst_30 = arith.constant dense<0.000000e+00> : vector<8x32xf32>
    %50 = tpu.matmul %48, %49, %cst_30 {dimension_numbers = #tpu.dot_dimension_numbers<[1], [0], [0], [1], [0, 0, 1, 1], [], []>} : vector<8x16xf32>, vector<16x32xf32>, vector<8x32xf32> -> vector<8x32xf32>
    %51 = arith.addf %47, %50 : vector<8x32xf32>
    %52 = vector.extract_strided_slice %14 {offsets = [72, 0], sizes = [8, 16], strides = [1, 1]} : vector<128x16xf32> to vector<8x16xf32>
    %c144 = arith.constant 144 : index
    %c0_31 = arith.constant 0 : index
    %53 = vector.load %arg5[%c144, %c0_31] : memref<256x32xf32, #tpu.memory_space<vmem>>, vector<16x32xf32>
    %cst_32 = arith.constant dense<0.000000e+00> : vector<8x32xf32>
    %54 = tpu.matmul %52, %53, %cst_32 {dimension_numbers = #tpu.dot_dimension_numbers<[1], [0], [0], [1], [0, 0, 1, 1], [], []>} : vector<8x16xf32>, vector<16x32xf32>, vector<8x32xf32> -> vector<8x32xf32>
    %55 = arith.addf %51, %54 : vector<8x32xf32>
    %56 = vector.extract_strided_slice %14 {offsets = [80, 0], sizes = [8, 16], strides = [1, 1]} : vector<128x16xf32> to vector<8x16xf32>
    %c160 = arith.constant 160 : index
    %c0_33 = arith.constant 0 : index
    %57 = vector.load %arg5[%c160, %c0_33] : memref<256x32xf32, #tpu.memory_space<vmem>>, vector<16x32xf32>
    %cst_34 = arith.constant dense<0.000000e+00> : vector<8x32xf32>
    %58 = tpu.matmul %56, %57, %cst_34 {dimension_numbers = #tpu.dot_dimension_numbers<[1], [0], [0], [1], [0, 0, 1, 1], [], []>} : vector<8x16xf32>, vector<16x32xf32>, vector<8x32xf32> -> vector<8x32xf32>
    %59 = arith.addf %55, %58 : vector<8x32xf32>
    %60 = vector.extract_strided_slice %14 {offsets = [88, 0], sizes = [8, 16], strides = [1, 1]} : vector<128x16xf32> to vector<8x16xf32>
    %c176 = arith.constant 176 : index
    %c0_35 = arith.constant 0 : index
    %61 = vector.load %arg5[%c176, %c0_35] : memref<256x32xf32, #tpu.memory_space<vmem>>, vector<16x32xf32>
    %cst_36 = arith.constant dense<0.000000e+00> : vector<8x32xf32>
    %62 = tpu.matmul %60, %61, %cst_36 {dimension_numbers = #tpu.dot_dimension_numbers<[1], [0], [0], [1], [0, 0, 1, 1], [], []>} : vector<8x16xf32>, vector<16x32xf32>, vector<8x32xf32> -> vector<8x32xf32>
    %63 = arith.addf %59, %62 : vector<8x32xf32>
    %64 = vector.extract_strided_slice %14 {offsets = [96, 0], sizes = [8, 16], strides = [1, 1]} : vector<128x16xf32> to vector<8x16xf32>
    %c192 = arith.constant 192 : index
    %c0_37 = arith.constant 0 : index
    %65 = vector.load %arg5[%c192, %c0_37] : memref<256x32xf32, #tpu.memory_space<vmem>>, vector<16x32xf32>
    %cst_38 = arith.constant dense<0.000000e+00> : vector<8x32xf32>
    %66 = tpu.matmul %64, %65, %cst_38 {dimension_numbers = #tpu.dot_dimension_numbers<[1], [0], [0], [1], [0, 0, 1, 1], [], []>} : vector<8x16xf32>, vector<16x32xf32>, vector<8x32xf32> -> vector<8x32xf32>
    %67 = arith.addf %63, %66 : vector<8x32xf32>
    %68 = vector.extract_strided_slice %14 {offsets = [104, 0], sizes = [8, 16], strides = [1, 1]} : vector<128x16xf32> to vector<8x16xf32>
    %c208 = arith.constant 208 : index
    %c0_39 = arith.constant 0 : index
    %69 = vector.load %arg5[%c208, %c0_39] : memref<256x32xf32, #tpu.memory_space<vmem>>, vector<16x32xf32>
    %cst_40 = arith.constant dense<0.000000e+00> : vector<8x32xf32>
    %70 = tpu.matmul %68, %69, %cst_40 {dimension_numbers = #tpu.dot_dimension_numbers<[1], [0], [0], [1], [0, 0, 1, 1], [], []>} : vector<8x16xf32>, vector<16x32xf32>, vector<8x32xf32> -> vector<8x32xf32>
    %71 = arith.addf %67, %70 : vector<8x32xf32>
    %72 = vector.extract_strided_slice %14 {offsets = [112, 0], sizes = [8, 16], strides = [1, 1]} : vector<128x16xf32> to vector<8x16xf32>
    %c224 = arith.constant 224 : index
    %c0_41 = arith.constant 0 : index
    %73 = vector.load %arg5[%c224, %c0_41] : memref<256x32xf32, #tpu.memory_space<vmem>>, vector<16x32xf32>
    %cst_42 = arith.constant dense<0.000000e+00> : vector<8x32xf32>
    %74 = tpu.matmul %72, %73, %cst_42 {dimension_numbers = #tpu.dot_dimension_numbers<[1], [0], [0], [1], [0, 0, 1, 1], [], []>} : vector<8x16xf32>, vector<16x32xf32>, vector<8x32xf32> -> vector<8x32xf32>
    %75 = arith.addf %71, %74 : vector<8x32xf32>
    %76 = vector.extract_strided_slice %14 {offsets = [120, 0], sizes = [8, 16], strides = [1, 1]} : vector<128x16xf32> to vector<8x16xf32>
    %c240 = arith.constant 240 : index
    %c0_43 = arith.constant 0 : index
    %77 = vector.load %arg5[%c240, %c0_43] : memref<256x32xf32, #tpu.memory_space<vmem>>, vector<16x32xf32>
    %cst_44 = arith.constant dense<0.000000e+00> : vector<8x32xf32>
    %78 = tpu.matmul %76, %77, %cst_44 {dimension_numbers = #tpu.dot_dimension_numbers<[1], [0], [0], [1], [0, 0, 1, 1], [], []>} : vector<8x16xf32>, vector<16x32xf32>, vector<8x32xf32> -> vector<8x32xf32>
    %79 = arith.addf %75, %78 : vector<8x32xf32>
    %c0_45 = arith.constant 0 : index
    %c0_46 = arith.constant 0 : index
    %80 = vector.load %arg6[%c0_45, %c0_46] : memref<1x32xf32, #tpu.memory_space<vmem>>, vector<1x32xf32>
    %81 = vector.broadcast %80 : vector<1x32xf32> to vector<8x32xf32>
    %82 = arith.addf %79, %81 : vector<8x32xf32>
    %cst_47 = arith.constant 0.000000e+00 : f32
    %83 = vector.broadcast %cst_47 : f32 to vector<8x32xf32>
    %84 = arith.cmpf oge, %82, %83 : vector<8x32xf32>
    %85 = vector.broadcast %1 : f32 to vector<8x32xf32>
    %86 = arith.mulf %85, %82 : vector<8x32xf32>
    %87 = arith.select %84, %82, %86 : vector<8x32xi1>, vector<8x32xf32>
    %cst_48 = arith.constant 0.000000e+00 : f32
    %88 = vector.broadcast %cst_48 : f32 to vector<2x512xf32>
    %89 = vector.extract_strided_slice %87 {offsets = [0, 0], sizes = [2, 32], strides = [1, 1]} : vector<8x32xf32> to vector<2x32xf32>
    %c0_49 = arith.constant 0 : index
    %c0_50 = arith.constant 0 : index
    %90 = vector.load %arg7[%c0_49, %c0_50] : memref<128x512xf32, #tpu.memory_space<vmem>>, vector<32x512xf32>
    %cst_51 = arith.constant dense<0.000000e+00> : vector<2x512xf32>
    %91 = tpu.matmul %89, %90, %cst_51 {dimension_numbers = #tpu.dot_dimension_numbers<[1], [0], [0], [1], [0, 0, 1, 1], [], []>} : vector<2x32xf32>, vector<32x512xf32>, vector<2x512xf32> -> vector<2x512xf32>
    %92 = arith.addf %88, %91 : vector<2x512xf32>
    %93 = vector.extract_strided_slice %87 {offsets = [2, 0], sizes = [2, 32], strides = [1, 1]} : vector<8x32xf32> to vector<2x32xf32>
    %c32_52 = arith.constant 32 : index
    %c0_53 = arith.constant 0 : index
    %94 = vector.load %arg7[%c32_52, %c0_53] : memref<128x512xf32, #tpu.memory_space<vmem>>, vector<32x512xf32>
    %cst_54 = arith.constant dense<0.000000e+00> : vector<2x512xf32>
    %95 = tpu.matmul %93, %94, %cst_54 {dimension_numbers = #tpu.dot_dimension_numbers<[1], [0], [0], [1], [0, 0, 1, 1], [], []>} : vector<2x32xf32>, vector<32x512xf32>, vector<2x512xf32> -> vector<2x512xf32>
    %96 = arith.addf %92, %95 : vector<2x512xf32>
    %97 = vector.extract_strided_slice %87 {offsets = [4, 0], sizes = [2, 32], strides = [1, 1]} : vector<8x32xf32> to vector<2x32xf32>
    %c64_55 = arith.constant 64 : index
    %c0_56 = arith.constant 0 : index
    %98 = vector.load %arg7[%c64_55, %c0_56] : memref<128x512xf32, #tpu.memory_space<vmem>>, vector<32x512xf32>
    %cst_57 = arith.constant dense<0.000000e+00> : vector<2x512xf32>
    %99 = tpu.matmul %97, %98, %cst_57 {dimension_numbers = #tpu.dot_dimension_numbers<[1], [0], [0], [1], [0, 0, 1, 1], [], []>} : vector<2x32xf32>, vector<32x512xf32>, vector<2x512xf32> -> vector<2x512xf32>
    %100 = arith.addf %96, %99 : vector<2x512xf32>
    %101 = vector.extract_strided_slice %87 {offsets = [6, 0], sizes = [2, 32], strides = [1, 1]} : vector<8x32xf32> to vector<2x32xf32>
    %c96_58 = arith.constant 96 : index
    %c0_59 = arith.constant 0 : index
    %102 = vector.load %arg7[%c96_58, %c0_59] : memref<128x512xf32, #tpu.memory_space<vmem>>, vector<32x512xf32>
    %cst_60 = arith.constant dense<0.000000e+00> : vector<2x512xf32>
    %103 = tpu.matmul %101, %102, %cst_60 {dimension_numbers = #tpu.dot_dimension_numbers<[1], [0], [0], [1], [0, 0, 1, 1], [], []>} : vector<2x32xf32>, vector<32x512xf32>, vector<2x512xf32> -> vector<2x512xf32>
    %104 = arith.addf %100, %103 : vector<2x512xf32>
    %c0_61 = arith.constant 0 : index
    %c0_62 = arith.constant 0 : index
    %105 = vector.load %arg8[%c0_61, %c0_62] : memref<1x512xf32, #tpu.memory_space<vmem>>, vector<1x512xf32>
    %106 = vector.broadcast %105 : vector<1x512xf32> to vector<2x512xf32>
    %107 = arith.addf %104, %106 : vector<2x512xf32>
    %cst_63 = arith.constant 0.000000e+00 : f32
    %108 = vector.broadcast %cst_63 : f32 to vector<2x512xf32>
    %109 = arith.cmpf oge, %107, %108 : vector<2x512xf32>
    %110 = vector.broadcast %2 : f32 to vector<2x512xf32>
    %111 = arith.mulf %110, %107 : vector<2x512xf32>
    %112 = arith.select %109, %107, %111 : vector<2x512xi1>, vector<2x512xf32>
    %c0_64 = arith.constant 0 : index
    %c0_65 = arith.constant 0 : index
    %113 = vector.load %arg9[%c0_64, %c0_65] : memref<512x8xf32, #tpu.memory_space<vmem>>, vector<512x8xf32>
    %cst_66 = arith.constant dense<0.000000e+00> : vector<2x8xf32>
    %114 = tpu.matmul %112, %113, %cst_66 {dimension_numbers = #tpu.dot_dimension_numbers<[1], [0], [0], [1], [0, 0, 1, 1], [], []>} : vector<2x512xf32>, vector<512x8xf32>, vector<2x8xf32> -> vector<2x8xf32>
    %c0_67 = arith.constant 0 : index
    %c0_68 = arith.constant 0 : index
    %115 = vector.load %arg10[%c0_67, %c0_68] : memref<1x8xf32, #tpu.memory_space<vmem>>, vector<1x8xf32>
    %116 = vector.broadcast %115 : vector<1x8xf32> to vector<2x8xf32>
    %117 = arith.addf %114, %116 : vector<2x8xf32>
    %118 = vector.extract_strided_slice %117 {offsets = [0, 0], sizes = [2, 1], strides = [1, 1]} : vector<2x8xf32> to vector<2x1xf32>
    %cst_69 = arith.constant dense<0.000000e+00> : vector<2xf32>
    %119 = vector.multi_reduction <add>, %117, %cst_69 [1] : vector<2x8xf32> to vector<2xf32>
    %120 = vector.shape_cast %119 : vector<2xf32> to vector<2x1xf32>
    %121 = arith.subf %120, %118 : vector<2x1xf32>
    %cst_70 = arith.constant 0.166666672 : f32
    %122 = vector.broadcast %cst_70 : f32 to vector<2x1xf32>
    %123 = arith.mulf %121, %122 : vector<2x1xf32>
    %124 = vector.broadcast %118 : vector<2x1xf32> to vector<2x8xf32>
    %125 = arith.addf %117, %124 : vector<2x8xf32>
    %126 = vector.broadcast %123 : vector<2x1xf32> to vector<2x8xf32>
    %127 = arith.subf %125, %126 : vector<2x8xf32>
    %c0_71 = arith.constant 0 : index
    %c0_72 = arith.constant 0 : index
    %c0_73 = arith.constant 0 : index
    %128 = vector.load %arg11[%c0_71, %c0_72, %c0_73] : memref<1x2x8xf32, #tpu.memory_space<vmem>>, vector<1x2x8xf32>
    %129 = vector.shape_cast %128 : vector<1x2x8xf32> to vector<2x8xf32>
    %130 = vector.shape_cast %127 : vector<2x8xf32> to vector<1x2x8xf32>
    tpu.vector_store %arg11[%c0_71, %c0_72, %c0_73], %130 {strides = array<i32>} : memref<1x2x8xf32, #tpu.memory_space<vmem>>, vector<1x2x8xf32>,
    return
  }
  func.func @transform_0(%arg0: i32) -> (i32, i32) {
    %c0_i32 = arith.constant 0 : i32
    %c0_i32_0 = arith.constant 0 : i32
    %c0_i32_1 = arith.constant 0 : i32
    return %c0_i32, %c0_i32_0 : i32, i32
  }
  func.func @transform_1(%arg0: i32) -> (i32, i32, i32) {
    %c0_i32 = arith.constant 0 : i32
    %c0_i32_0 = arith.constant 0 : i32
    %c0_i32_1 = arith.constant 0 : i32
    return %arg0, %c0_i32, %c0_i32_0 : i32, i32, i32
  }
  func.func @transform_2(%arg0: i32) -> (i32, i32) {
    %c0_i32 = arith.constant 0 : i32
    %c0_i32_0 = arith.constant 0 : i32
    %c0_i32_1 = arith.constant 0 : i32
    return %c0_i32, %c0_i32_0 : i32, i32
  }
  func.func @transform_3(%arg0: i32) -> (i32, i32) {
    %c0_i32 = arith.constant 0 : i32
    %c0_i32_0 = arith.constant 0 : i32
    %c0_i32_1 = arith.constant 0 : i32
    return %c0_i32, %c0_i32_0 : i32, i32
  }
  func.func @transform_4(%arg0: i32) -> (i32, i32) {
    %c0_i32 = arith.constant 0 : i32
    %c0_i32_0 = arith.constant 0 : i32
    %c0_i32_1 = arith.constant 0 : i32
    return %c0_i32, %c0_i32_0 : i32, i32
  }
  func.func @transform_5(%arg0: i32) -> (i32, i32) {
    %c0_i32 = arith.constant 0 : i32
    %c0_i32_0 = arith.constant 0 : i32
    %c0_i32_1 = arith.constant 0 : i32
    return %c0_i32, %c0_i32_0 : i32, i32
  }
  func.func @transform_6(%arg0: i32) -> (i32, i32) {
    %c0_i32 = arith.constant 0 : i32
    %c0_i32_0 = arith.constant 0 : i32
    %c0_i32_1 = arith.constant 0 : i32
    return %c0_i32, %c0_i32_0 : i32, i32
  }
  func.func @transform_7(%arg0: i32) -> (i32, i32) {
    %c0_i32 = arith.constant 0 : i32
    %c0_i32_0 = arith.constant 0 : i32
    %c0_i32_1 = arith.constant 0 : i32
    return %c0_i32, %c0_i32_0 : i32, i32
  }
  func.func @transform_8(%arg0: i32) -> (i32, i32) {
    %c0_i32 = arith.constant 0 : i32
    %c0_i32_0 = arith.constant 0 : i32
    %c0_i32_1 = arith.constant 0 : i32
    return %c0_i32, %c0_i32_0 : i32, i32
  }
  func.func @transform_9(%arg0: i32) -> (i32, i32) {
    %c0_i32 = arith.constant 0 : i32
    %c0_i32_0 = arith.constant 0 : i32
    %c0_i32_1 = arith.constant 0 : i32
    return %c0_i32, %c0_i32_0 : i32, i32
  }
  func.func @transform_10(%arg0: i32) -> (i32, i32, i32) {
    %c0_i32 = arith.constant 0 : i32
    %c0_i32_0 = arith.constant 0 : i32
    %c0_i32_1 = arith.constant 0 : i32
    return %arg0, %c0_i32, %c0_i32_0 : i32, i32, i32
  }
}

</mosaic_0001>

<llo_original>
// kernel: forward.1
$region0: #{forward.1}
  #allocation0 [shape = 'u32[]', space=smem, size = 0x4, offset = 0x4, fixed_abs, tag = 'smem constant byte address 0x4 - core index']
  #allocation1 [shape = 'u32[144,128]{1,0:T(1,128)}', space=vmem, size = 0x12000, scoped, tag = 'internal scratch']
  %s0 = inlined_call_operand.vmem [shape: f32[1,3], index: 0, kind: input, shape index: {}]
  %s1 = inlined_call_operand.vmem [shape: f32[1,128,256], index: 1, kind: input, shape index: {}]
  %s2 = inlined_call_operand.vmem [shape: f32[256,16], index: 2, kind: input, shape index: {}]
  %s3 = inlined_call_operand.vmem [shape: f32[1,16], index: 3, kind: input, shape index: {}]
  %s4 = inlined_call_operand.vmem [shape: f32[256,32], index: 4, kind: input, shape index: {}]
  %s5 = inlined_call_operand.vmem [shape: f32[1,32], index: 5, kind: input, shape index: {}]
  %s6 = inlined_call_operand.vmem [shape: f32[128,512], index: 6, kind: input, shape index: {}]
  %s7 = inlined_call_operand.vmem [shape: f32[1,512], index: 7, kind: input, shape index: {}]
  %s8 = inlined_call_operand.vmem [shape: f32[512,8], index: 8, kind: input, shape index: {}]
  %s9 = inlined_call_operand.vmem [shape: f32[1,8], index: 9, kind: input, shape index: {}]
  %s10 = inlined_call_operand.vmem [shape: f32[1,2,8], index: 10, kind: output, shape index: {}]
  %s11 = sld [smem:[#allocation0]]
  $region54: #{forward.1} parent=0
    _
  %s13 = ssub.s32 1, %s11
  %s14 = scalar_select 0, %s13, %s11
  $region1: #{forward.1} parent=0
    #allocation2 [shape = 'u8[512]{0}', space=smem, size = 0x200, scoped, tag = 'input window, operand 0, single buffered']
    #allocation3 [shape = 's32[1]{0}', space=sflag, size = 0x4, scoped, tag = 'scoped memory for forward.1']
    %15 = vsyncpa [#allocation3], 0
    // Predicated region
    $region2: #{forward.1} parent=1 // pred_check
      _
    $region3: #{forward.1} parent=1 // pred_check_branch
      %17 = sbr.rel (0) target = $region5
    $region4: #{forward.1} parent=1 // pred_region
      %s19 = ssub.s32 16, 16
      %20 = vsyncadd [#allocation3], %s19
      %s22 = sshll.u32 %s0, 4
      %s23 = int_to_ptr.vmem [resolvable:$true] %s22
      %25 = dma.vmem_to_smem %s23, 16, [#allocation2], [#allocation3]
    $region5: #{forward.1} parent=1 // pred_fallthru
      _
    // Predicated region
    $region6: #{forward.1} parent=1 // pred_check
      _
    $region7: #{forward.1} parent=1 // pred_check_branch
      %27 = sbr.rel (0) target = $region9
    $region8: #{forward.1} parent=1 // pred_region
      _
    $region9: #{forward.1} parent=1 // pred_fallthru
      _
    // Predicated region
    $region10: #{forward.1} parent=1 // pred_check
      _
    $region11: #{forward.1} parent=1 // pred_check_branch
      %29 = sbr.rel (0) target = $region13
    $region12: #{forward.1} parent=1 // pred_region
      _
    $region13: #{forward.1} parent=1 // pred_fallthru
      _
    // Predicated region
    $region14: #{forward.1} parent=1 // pred_check
      _
    $region15: #{forward.1} parent=1 // pred_check_branch
      %31 = sbr.rel (0) target = $region17
    $region16: #{forward.1} parent=1 // pred_region
      _
    $region17: #{forward.1} parent=1 // pred_fallthru
      _
    // Predicated region
    $region18: #{forward.1} parent=1 // pred_check
      _
    $region19: #{forward.1} parent=1 // pred_check_branch
      %33 = sbr.rel (0) target = $region21
    $region20: #{forward.1} parent=1 // pred_region
      _
    $region21: #{forward.1} parent=1 // pred_fallthru
      _
    // Predicated region
    $region22: #{forward.1} parent=1 // pred_check
      _
    $region23: #{forward.1} parent=1 // pred_check_branch
      %35 = sbr.rel (0) target = $region25
    $region24: #{forward.1} parent=1 // pred_region
      _
    $region25: #{forward.1} parent=1 // pred_fallthru
      _
    // Predicated region
    $region26: #{forward.1} parent=1 // pred_check
      _
    $region27: #{forward.1} parent=1 // pred_check_branch
      %37 = sbr.rel (0) target = $region29
    $region28: #{forward.1} parent=1 // pred_region
      _
    $region29: #{forward.1} parent=1 // pred_fallthru
      _
    // Predicated region
    $region30: #{forward.1} parent=1 // pred_check
      _
    $region31: #{forward.1} parent=1 // pred_check_branch
      %39 = sbr.rel (0) target = $region33
    $region32: #{forward.1} parent=1 // pred_region
      _
    $region33: #{forward.1} parent=1 // pred_fallthru
      _
    // Predicated region
    $region34: #{forward.1} parent=1 // pred_check
      _
    $region35: #{forward.1} parent=1 // pred_check_branch
      %41 = sbr.rel (0) target = $region37
    $region36: #{forward.1} parent=1 // pred_region
      _
    $region37: #{forward.1} parent=1 // pred_fallthru
      _
    // Predicated region
    $region38: #{forward.1} parent=1 // pred_check
      _
    $region39: #{forward.1} parent=1 // pred_check_branch
      %43 = sbr.rel (0) target = $region41
    $region40: #{forward.1} parent=1 // pred_region
      _
    $region41: #{forward.1} parent=1 // pred_fallthru
      _
    // Predicated region
    $region42: #{forward.1} parent=1 // pred_check
      _
    $region43: #{forward.1} parent=1 // pred_check_branch
      %45 = sbr.rel (0) target = $region45
    $region44: #{forward.1} parent=1 // pred_region
      %46 = dma.done [#allocation3], 16
    $region45: #{forward.1} parent=1 // pred_fallthru
      _
    %47 = sfence
    %s48 = sld [smem:[#allocation2]]
    %s49 = sld [smem:[#allocation2 + $0x1]]
    %s50 = sld [smem:[#allocation2 + $0x2]]
    %v51 = vld [vmem:[%s1] sm:$0xff]
    %v52 = vld [vmem:[%s1 + $0x8] sm:$0xff]
    %v53 = vld [vmem:[%s1 + $0x10] sm:$0xff]
    %v54 = vld [vmem:[%s1 + $0x18] sm:$0xff]
    %v55 = vld [vmem:[%s1 + $0x20] sm:$0xff]
    %v56 = vld [vmem:[%s1 + $0x28] sm:$0xff]
    %v57 = vld [vmem:[%s1 + $0x30] sm:$0xff]
    %v58 = vld [vmem:[%s1 + $0x38] sm:$0xff]
    %v59 = vld [vmem:[%s1 + $0x40] sm:$0xff]
    %v60 = vld [vmem:[%s1 + $0x48] sm:$0xff]
    %v61 = vld [vmem:[%s1 + $0x50] sm:$0xff]
    %v62 = vld [vmem:[%s1 + $0x58] sm:$0xff]
    %v63 = vld [vmem:[%s1 + $0x60] sm:$0xff]
    %v64 = vld [vmem:[%s1 + $0x68] sm:$0xff]
    %v65 = vld [vmem:[%s1 + $0x70] sm:$0xff]
    %v66 = vld [vmem:[%s1 + $0x78] sm:$0xff]
    %v67 = vld [vmem:[%s1 + $0x80] sm:$0xff]
    %v68 = vld [vmem:[%s1 + $0x88] sm:$0xff]
    %v69 = vld [vmem:[%s1 + $0x90] sm:$0xff]
    %v70 = vld [vmem:[%s1 + $0x98] sm:$0xff]
    %v71 = vld [vmem:[%s1 + $0xa0] sm:$0xff]
    %v72 = vld [vmem:[%s1 + $0xa8] sm:$0xff]
    %v73 = vld [vmem:[%s1 + $0xb0] sm:$0xff]
    %v74 = vld [vmem:[%s1 + $0xb8] sm:$0xff]
    %v75 = vld [vmem:[%s1 + $0xc0] sm:$0xff]
    %v76 = vld [vmem:[%s1 + $0xc8] sm:$0xff]
    %v77 = vld [vmem:[%s1 + $0xd0] sm:$0xff]
    %v78 = vld [vmem:[%s1 + $0xd8] sm:$0xff]
    %v79 = vld [vmem:[%s1 + $0xe0] sm:$0xff]
    %v80 = vld [vmem:[%s1 + $0xe8] sm:$0xff]
    %v81 = vld [vmem:[%s1 + $0xf0] sm:$0xff]
    %v82 = vld [vmem:[%s1 + $0xf8] sm:$0xff]
    %v83 = vld [vmem:[%s2] sm:$0xff]
    %v84 = vld [vmem:[%s2 + $0x8] sm:$0xff]
    %v85 = vld [vmem:[%s2 + $0x10] sm:$0xff]
    %v86 = vld [vmem:[%s2 + $0x18] sm:$0xff]
    %v87 = vld [vmem:[%s2 + $0x20] sm:$0xff]
    %v88 = vld [vmem:[%s2 + $0x28] sm:$0xff]
    %v89 = vld [vmem:[%s2 + $0x30] sm:$0xff]
    %v90 = vld [vmem:[%s2 + $0x38] sm:$0xff]
    %v91 = vld [vmem:[%s2 + $0x40] sm:$0xff]
    %v92 = vld [vmem:[%s2 + $0x48] sm:$0xff]
    %v93 = vld [vmem:[%s2 + $0x50] sm:$0xff]
    %v94 = vld [vmem:[%s2 + $0x58] sm:$0xff]
    %v95 = vld [vmem:[%s2 + $0x60] sm:$0xff]
    %v96 = vld [vmem:[%s2 + $0x68] sm:$0xff]
    %v97 = vld [vmem:[%s2 + $0x70] sm:$0xff]
    %v98 = vld [vmem:[%s2 + $0x78] sm:$0xff]
    %v99 = vld [vmem:[%s2 + $0x80] sm:$0xff]
    %v100 = vld [vmem:[%s2 + $0x88] sm:$0xff]
    %v101 = vld [vmem:[%s2 + $0x90] sm:$0xff]
    %v102 = vld [vmem:[%s2 + $0x98] sm:$0xff]
    %v103 = vld [vmem:[%s2 + $0xa0] sm:$0xff]
    %v104 = vld [vmem:[%s2 + $0xa8] sm:$0xff]
    %v105 = vld [vmem:[%s2 + $0xb0] sm:$0xff]
    %v106 = vld [vmem:[%s2 + $0xb8] sm:$0xff]
    %v107 = vld [vmem:[%s2 + $0xc0] sm:$0xff]
    %v108 = vld [vmem:[%s2 + $0xc8] sm:$0xff]
    %v109 = vld [vmem:[%s2 + $0xd0] sm:$0xff]
    %v110 = vld [vmem:[%s2 + $0xd8] sm:$0xff]
    %v111 = vld [vmem:[%s2 + $0xe0] sm:$0xff]
    %v112 = vld [vmem:[%s2 + $0xe8] sm:$0xff]
    %v113 = vld [vmem:[%s2 + $0xf0] sm:$0xff]
    %v114 = vld [vmem:[%s2 + $0xf8] sm:$0xff]
    %v115 = vld [vmem:[%s3] sm:$0x1]
    %v117 = vlaneseq
    %v118 = vshrl.u32 %v117, 7
    %v119 = vsub.s32 0, %v118
    %v120 = vrot.slane %v115, %v119
    %122 = vmatprep.subr.mxu0 0.0
    %123 = vmatpush1.msra.mxu0 %v83
    %124 = vmatprep.subr.mxu0 0.0
    %125 = vmatpush1.msra.mxu0 %v84
    %126 = vmatprep.subr.mxu0 0.0
    %127 = vmatpush1.msra.mxu0 %v85
    %128 = vmatprep.subr.mxu0 0.0
    %129 = vmatpush1.msra.mxu0 %v86
    %130 = vmatprep.subr.mxu0 0.0
    %131 = vmatpush1.msra.mxu0 %v87
    %132 = vmatprep.subr.mxu0 0.0
    %133 = vmatpush1.msra.mxu0 %v88
    %134 = vmatprep.subr.mxu0 0.0
    %135 = vmatpush1.msra.mxu0 %v89
    %136 = vmatprep.subr.mxu0 0.0
    %137 = vmatpush1.msra.mxu0 %v90
    %138 = vmatprep.subr.mxu0 0.0
    %139 = vmatpush1.msra.mxu0 %v91
    %140 = vmatprep.subr.mxu0 0.0
    %141 = vmatpush1.msra.mxu0 %v92
    %142 = vmatprep.subr.mxu0 0.0
    %143 = vmatpush1.msra.mxu0 %v93
    %144 = vmatprep.subr.mxu0 0.0
    %145 = vmatpush1.msra.mxu0 %v94
    %146 = vmatprep.subr.mxu0 0.0
    %147 = vmatpush1.msra.mxu0 %v95
    %148 = vmatprep.subr.mxu0 0.0
    %149 = vmatpush1.msra.mxu0 %v96
    %150 = vmatprep.subr.mxu0 0.0
    %151 = vmatpush1.msra.mxu0 %v97
    %152 = vmatprep.subr.mxu0 0.0
    %153 = vmatpush1.msra.mxu0 %v98
    %154 = vmatprep.subr.mxu0 0.0
    %155 = vmatpush1.msra.mxu0 %v99
    %156 = vmatprep.subr.mxu0 0.0
    %157 = vmatpush1.msra.mxu0 %v100
    %158 = vmatprep.subr.mxu0 0.0
    %159 = vmatpush1.msra.mxu0 %v101
    %160 = vmatprep.subr.mxu0 0.0
    %161 = vmatpush1.msra.mxu0 %v102
    %162 = vmatprep.subr.mxu0 0.0
    %163 = vmatpush1.msra.mxu0 %v103
    %164 = vmatprep.subr.mxu0 0.0
    %165 = vmatpush1.msra.mxu0 %v104
    %166 = vmatprep.subr.mxu0 0.0
    %167 = vmatpush1.msra.mxu0 %v105
    %168 = vmatprep.subr.mxu0 0.0
    %169 = vmatpush1.msra.mxu0 %v106
    %170 = vmatprep.subr.mxu0 0.0
    %171 = vmatpush1.msra.mxu0 %v107
    %172 = vmatprep.subr.mxu0 0.0
    %173 = vmatpush1.msra.mxu0 %v108
    %174 = vmatprep.subr.mxu0 0.0
    %175 = vmatpush1.msra.mxu0 %v109
    %176 = vmatprep.subr.mxu0 0.0
    %177 = vmatpush1.msra.mxu0 %v110
    %178 = vmatprep.subr.mxu0 0.0
    %179 = vmatpush1.msra.mxu0 %v111
    %180 = vmatprep.subr.mxu0 0.0
    %181 = vmatpush1.msra.mxu0 %v112
    %182 = vmatprep.subr.mxu0 0.0
    %183 = vmatpush1.msra.mxu0 %v113
    %184 = vmatprep.subr.mxu0 0.0
    %185 = vmatpush1.msra.mxu0 %v114
    %186 = vmatprep.mubr.f32.mxu0 %v52
    %187 = vmatmul.mubr.f32.gmra.mrb[0].mxu0 %v51
    %v188 = vpop.f32.mrb[0].mxu0
    %v189 = vadd.f32 %v120, %v188
    %v190 = vpop.f32.mrb[0].mxu0
    %191 = vmatprep.mubr.f32.mxu0 %v54
    %192 = vmatmul.mubr.f32.gmra.mrb[0].mxu0 %v53
    %v193 = vpop.f32.mrb[0].mxu0
    %v194 = vadd.f32 %v120, %v193
    %v195 = vpop.f32.mrb[0].mxu0
    %196 = vmatprep.mubr.f32.mxu0 %v56
    %197 = vmatmul.mubr.f32.gmra.mrb[0].mxu0 %v55
    %v198 = vpop.f32.mrb[0].mxu0
    %v199 = vadd.f32 %v120, %v198
    %v200 = vpop.f32.mrb[0].mxu0
    %201 = vmatprep.mubr.f32.mxu0 %v58
    %202 = vmatmul.mubr.f32.gmra.mrb[0].mxu0 %v57
    %v203 = vpop.f32.mrb[0].mxu0
    %v204 = vadd.f32 %v120, %v203
    %v205 = vpop.f32.mrb[0].mxu0
    %206 = vmatprep.mubr.f32.mxu0 %v60
    %207 = vmatmul.mubr.f32.gmra.mrb[0].mxu0 %v59
    %v208 = vpop.f32.mrb[0].mxu0
    %v209 = vadd.f32 %v120, %v208
    %v210 = vpop.f32.mrb[0].mxu0
    %211 = vmatprep.mubr.f32.mxu0 %v62
    %212 = vmatmul.mubr.f32.gmra.mrb[0].mxu0 %v61
    %v213 = vpop.f32.mrb[0].mxu0
    %v214 = vadd.f32 %v120, %v213
    %v215 = vpop.f32.mrb[0].mxu0
    %216 = vmatprep.mubr.f32.mxu0 %v64
    %217 = vmatmul.mubr.f32.gmra.mrb[0].mxu0 %v63
    %v218 = vpop.f32.mrb[0].mxu0
    %v219 = vadd.f32 %v120, %v218
    %v220 = vpop.f32.mrb[0].mxu0
    %221 = vmatprep.mubr.f32.mxu0 %v66
    %222 = vmatmul.mubr.f32.gmra.mrb[0].mxu0 %v65
    %v223 = vpop.f32.mrb[0].mxu0
    %v224 = vadd.f32 %v120, %v223
    %v225 = vpop.f32.mrb[0].mxu0
    %226 = vmatprep.mubr.f32.mxu0 %v68
    %227 = vmatmul.mubr.f32.gmra.mrb[0].mxu0 %v67
    %v228 = vpop.f32.mrb[0].mxu0
    %v229 = vadd.f32 %v120, %v228
    %v230 = vpop.f32.mrb[0].mxu0
    %231 = vmatprep.mubr.f32.mxu0 %v70
    %232 = vmatmul.mubr.f32.gmra.mrb[0].mxu0 %v69
    %v233 = vpop.f32.mrb[0].mxu0
    %v234 = vadd.f32 %v120, %v233
    %v235 = vpop.f32.mrb[0].mxu0
    %236 = vmatprep.mubr.f32.mxu0 %v72
    %237 = vmatmul.mubr.f32.gmra.mrb[0].mxu0 %v71
    %v238 = vpop.f32.mrb[0].mxu0
    %v239 = vadd.f32 %v120, %v238
    %v240 = vpop.f32.mrb[0].mxu0
    %241 = vmatprep.mubr.f32.mxu0 %v74
    %242 = vmatmul.mubr.f32.gmra.mrb[0].mxu0 %v73
    %v243 = vpop.f32.mrb[0].mxu0
    %v244 = vadd.f32 %v120, %v243
    %v245 = vpop.f32.mrb[0].mxu0
    %246 = vmatprep.mubr.f32.mxu0 %v76
    %247 = vmatmul.mubr.f32.gmra.mrb[0].mxu0 %v75
    %v248 = vpop.f32.mrb[0].mxu0
    %v249 = vadd.f32 %v120, %v248
    %v250 = vpop.f32.mrb[0].mxu0
    %251 = vmatprep.mubr.f32.mxu0 %v78
    %252 = vmatmul.mubr.f32.gmra.mrb[0].mxu0 %v77
    %v253 = vpop.f32.mrb[0].mxu0
    %v254 = vadd.f32 %v120, %v253
    %v255 = vpop.f32.mrb[0].mxu0
    %256 = vmatprep.mubr.f32.mxu0 %v80
    %257 = vmatmul.mubr.f32.gmra.mrb[0].mxu0 %v79
    %v258 = vpop.f32.mrb[0].mxu0
    %v259 = vadd.f32 %v120, %v258
    %v260 = vpop.f32.mrb[0].mxu0
    %261 = vmatprep.mubr.f32.mxu0 %v82
    %262 = vmatmul.mubr.f32.gmra.mrb[0].mxu0 %v81
    %v263 = vpop.f32.mrb[0].mxu0
    %v264 = vadd.f32 %v120, %v263
    %v265 = vpop.f32.mrb[0].mxu0
    %266 = vdwg.mxu0
    %vm267 = vcmp.ge.f32.partialorder %v189, 0.0
    %vm268 = vcmp.ge.f32.partialorder %v194, 0.0
    %vm269 = vcmp.ge.f32.partialorder %v199, 0.0
    %vm270 = vcmp.ge.f32.partialorder %v204, 0.0
    %vm271 = vcmp.ge.f32.partialorder %v209, 0.0
    %vm272 = vcmp.ge.f32.partialorder %v214, 0.0
    %vm273 = vcmp.ge.f32.partialorder %v219, 0.0
    %vm274 = vcmp.ge.f32.partialorder %v224, 0.0
    %vm275 = vcmp.ge.f32.partialorder %v229, 0.0
    %vm276 = vcmp.ge.f32.partialorder %v234, 0.0
    %vm277 = vcmp.ge.f32.partialorder %v239, 0.0
    %vm278 = vcmp.ge.f32.partialorder %v244, 0.0
    %vm279 = vcmp.ge.f32.partialorder %v249, 0.0
    %vm280 = vcmp.ge.f32.partialorder %v254, 0.0
    %vm281 = vcmp.ge.f32.partialorder %v259, 0.0
    %vm282 = vcmp.ge.f32.partialorder %v264, 0.0
    %v283 = vstv %s48
    %v284 = vmul.f32 %v283, %v189
    %v285 = vmul.f32 %v283, %v194
    %v286 = vmul.f32 %v283, %v199
    %v287 = vmul.f32 %v283, %v204
    %v288 = vmul.f32 %v283, %v209
    %v289 = vmul.f32 %v283, %v214
    %v290 = vmul.f32 %v283, %v219
    %v291 = vmul.f32 %v283, %v224
    %v292 = vmul.f32 %v283, %v229
    %v293 = vmul.f32 %v283, %v234
    %v294 = vmul.f32 %v283, %v239
    %v295 = vmul.f32 %v283, %v244
    %v296 = vmul.f32 %v283, %v249
    %v297 = vmul.f32 %v283, %v254
    %v298 = vmul.f32 %v283, %v259
    %v299 = vmul.f32 %v283, %v264
    %v300 = vsel %vm267, %v189, %v284
    %v301 = vsel %vm268, %v194, %v285
    %v302 = vsel %vm269, %v199, %v286
    %v303 = vsel %vm270, %v204, %v287
    %v304 = vsel %vm271, %v209, %v288
    %v305 = vsel %vm272, %v214, %v289
    %v306 = vsel %vm273, %v219, %v290
    %v307 = vsel %vm274, %v224, %v291
    %v308 = vsel %vm275, %v229, %v292
    %v309 = vsel %vm276, %v234, %v293
    %v310 = vsel %vm277, %v239, %v294
    %v311 = vsel %vm278, %v244, %v295
    %v312 = vsel %vm279, %v249, %v296
    %v313 = vsel %vm280, %v254, %v297
    %v314 = vsel %vm281, %v259, %v298
    %v315 = vsel %vm282, %v264, %v299
    %v316 = vld [vmem:[%s4] sm:$0xff]
    %v317 = vld [vmem:[%s4 + $0x8] sm:$0xff]
    %v318 = vld [vmem:[%s4 + $0x10] sm:$0xff]
    %v319 = vld [vmem:[%s4 + $0x18] sm:$0xff]
    %vm320 = vcmask 130048
    %v322 = vsel %vm320, %v301, 0
    %324 = vmatprep.subr.mxu0 0.0
    %325 = vmatpush1.msra.mxu0 %v318
    %326 = vmatprep.subr.mxu0 0.0
    %327 = vmatpush1.msra.mxu0 %v319
    %328 = vmatprep.subr.mxu0 0.0
    %329 = vmatpush1.msra.mxu0 0.0
    %330 = vmatprep.subr.mxu0 0.0
    %331 = vmatpush1.msra.mxu0 0.0
    %332 = vmatprep.subr.mxu0 0.0
    %333 = vmatpush1.msra.mxu0 0.0
    %334 = vmatprep.subr.mxu0 0.0
    %335 = vmatpush1.msra.mxu0 0.0
    %336 = vmatprep.subr.mxu0 0.0
    %337 = vmatpush1.msra.mxu0 0.0
    %338 = vmatprep.subr.mxu0 0.0
    %339 = vmatpush1.msra.mxu0 0.0
    %340 = vmatprep.subr.mxu0 0.0
    %341 = vmatpush1.msra.mxu0 0.0
    %342 = vmatprep.subr.mxu0 0.0
    %343 = vmatpush1.msra.mxu0 0.0
    %344 = vmatprep.subr.mxu0 0.0
    %345 = vmatpush1.msra.mxu0 0.0
    %346 = vmatprep.subr.mxu0 0.0
    %347 = vmatpush1.msra.mxu0 0.0
    %348 = vmatprep.subr.mxu0 0.0
    %349 = vmatpush1.msra.mxu0 0.0
    %350 = vmatprep.subr.mxu0 0.0
    %351 = vmatpush1.msra.mxu0 0.0
    %352 = vmatprep.subr.mxu0 0.0
    %353 = vmatpush1.msra.mxu0 0.0
    %354 = vmatprep.subr.mxu0 0.0
    %355 = vmatpush1.msra.mxu0 0.0
    %356 = vmatprep.subr.mxu0 0.0
    %357 = vmatpush1.msra.mxu0 0.0
    %358 = vmatprep.subr.mxu0 0.0
    %359 = vmatpush1.msra.mxu0 0.0
    %360 = vmatprep.subr.mxu0 0.0
    %361 = vmatpush1.msra.mxu0 0.0
    %362 = vmatprep.subr.mxu0 0.0
    %363 = vmatpush1.msra.mxu0 0.0
    %364 = vmatprep.subr.mxu0 0.0
    %365 = vmatpush1.msra.mxu0 0.0
    %366 = vmatprep.subr.mxu0 0.0
    %367 = vmatpush1.msra.mxu0 0.0
    %368 = vmatprep.subr.mxu0 0.0
    %369 = vmatpush1.msra.mxu0 0.0
    %370 = vmatprep.subr.mxu0 0.0
    %371 = vmatpush1.msra.mxu0 0.0
    %372 = vmatprep.subr.mxu0 0.0
    %373 = vmatpush1.msra.mxu0 0.0
    %374 = vmatprep.subr.mxu0 0.0
    %375 = vmatpush1.msra.mxu0 0.0
    %376 = vmatprep.subr.mxu0 0.0
    %377 = vmatpush1.msra.mxu0 0.0
    %378 = vmatprep.subr.mxu0 0.0
    %379 = vmatpush1.msra.mxu0 0.0
    %380 = vmatprep.subr.mxu0 0.0
    %381 = vmatpush1.msra.mxu0 0.0
    %382 = vmatprep.subr.mxu0 0.0
    %383 = vmatpush1.msra.mxu0 0.0
    %384 = vmatprep.subr.mxu0 0.0
    %385 = vmatpush1.msra.mxu0 0.0
    %386 = vmatprep.subr.mxu0 0.0
    %387 = vmatpush1.msra.mxu0 0.0
    %388 = vmatprep.mubr.f32.mxu0 0.0
    %389 = vmatmul.mubr.f32.gmra.mrb[0].mxu0 %v322
    %v390 = vpop.f32.mrb[0].mxu0
    %v391 = vadd.f32 0.0, %v390
    %v392 = vpop.f32.mrb[0].mxu0
    %393 = vdwg.mxu0
    %v395 = vsel %vm320, %v300, 0
    %397 = vmatprep.subr.mxu0 0.0
    %398 = vmatpush1.msra.mxu0 %v316
    %399 = vmatprep.subr.mxu0 0.0
    %400 = vmatpush1.msra.mxu0 %v317
    %401 = vmatprep.subr.mxu0 0.0
    %402 = vmatpush1.msra.mxu0 0.0
    %403 = vmatprep.subr.mxu0 0.0
    %404 = vmatpush1.msra.mxu0 0.0
    %405 = vmatprep.subr.mxu0 0.0
    %406 = vmatpush1.msra.mxu0 0.0
    %407 = vmatprep.subr.mxu0 0.0
    %408 = vmatpush1.msra.mxu0 0.0
    %409 = vmatprep.subr.mxu0 0.0
    %410 = vmatpush1.msra.mxu0 0.0
    %411 = vmatprep.subr.mxu0 0.0
    %412 = vmatpush1.msra.mxu0 0.0
    %413 = vmatprep.subr.mxu0 0.0
    %414 = vmatpush1.msra.mxu0 0.0
    %415 = vmatprep.subr.mxu0 0.0
    %416 = vmatpush1.msra.mxu0 0.0
    %417 = vmatprep.subr.mxu0 0.0
    %418 = vmatpush1.msra.mxu0 0.0
    %419 = vmatprep.subr.mxu0 0.0
    %420 = vmatpush1.msra.mxu0 0.0
    %421 = vmatprep.subr.mxu0 0.0
    %422 = vmatpush1.msra.mxu0 0.0
    %423 = vmatprep.subr.mxu0 0.0
    %424 = vmatpush1.msra.mxu0 0.0
    %425 = vmatprep.subr.mxu0 0.0
    %426 = vmatpush1.msra.mxu0 0.0
    %427 = vmatprep.subr.mxu0 0.0
    %428 = vmatpush1.msra.mxu0 0.0
    %429 = vmatprep.subr.mxu0 0.0
    %430 = vmatpush1.msra.mxu0 0.0
    %431 = vmatprep.subr.mxu0 0.0
    %432 = vmatpush1.msra.mxu0 0.0
    %433 = vmatprep.subr.mxu0 0.0
    %434 = vmatpush1.msra.mxu0 0.0
    %435 = vmatprep.subr.mxu0 0.0
    %436 = vmatpush1.msra.mxu0 0.0
    %437 = vmatprep.subr.mxu0 0.0
    %438 = vmatpush1.msra.mxu0 0.0
    %439 = vmatprep.subr.mxu0 0.0
    %440 = vmatpush1.msra.mxu0 0.0
    %441 = vmatprep.subr.mxu0 0.0
    %442 = vmatpush1.msra.mxu0 0.0
    %443 = vmatprep.subr.mxu0 0.0
    %444 = vmatpush1.msra.mxu0 0.0
    %445 = vmatprep.subr.mxu0 0.0
    %446 = vmatpush1.msra.mxu0 0.0
    %447 = vmatprep.subr.mxu0 0.0
    %448 = vmatpush1.msra.mxu0 0.0
    %449 = vmatprep.subr.mxu0 0.0
    %450 = vmatpush1.msra.mxu0 0.0
    %451 = vmatprep.subr.mxu0 0.0
    %452 = vmatpush1.msra.mxu0 0.0
    %453 = vmatprep.subr.mxu0 0.0
    %454 = vmatpush1.msra.mxu0 0.0
    %455 = vmatprep.subr.mxu0 0.0
    %456 = vmatpush1.msra.mxu0 0.0
    %457 = vmatprep.subr.mxu0 0.0
    %458 = vmatpush1.msra.mxu0 0.0
    %459 = vmatprep.subr.mxu0 0.0
    %460 = vmatpush1.msra.mxu0 0.0
    %461 = vmatprep.mubr.f32.mxu0 0.0
    %462 = vmatmul.mubr.f32.gmra.mrb[0].mxu0 %v395
    %v463 = vpop.f32.mrb[0].mxu0
    %v464 = vadd.f32 %v391, %v463
    %v465 = vpop.f32.mrb[0].mxu0
    %466 = vdwg.mxu0
    %v467 = vld [vmem:[%s4 + $0x20] sm:$0xff]
    %v468 = vld [vmem:[%s4 + $0x28] sm:$0xff]
    %v470 = vsel %vm320, %v302, 0
    %472 = vmatprep.subr.mxu0 0.0
    %473 = vmatpush1.msra.mxu0 %v467
    %474 = vmatprep.subr.mxu0 0.0
    %475 = vmatpush1.msra.mxu0 %v468
    %476 = vmatprep.subr.mxu0 0.0
    %477 = vmatpush1.msra.mxu0 0.0
    %478 = vmatprep.subr.mxu0 0.0
    %479 = vmatpush1.msra.mxu0 0.0
    %480 = vmatprep.subr.mxu0 0.0
    %481 = vmatpush1.msra.mxu0 0.0
    %482 = vmatprep.subr.mxu0 0.0
    %483 = vmatpush1.msra.mxu0 0.0
    %484 = vmatprep.subr.mxu0 0.0
    %485 = vmatpush1.msra.mxu0 0.0
    %486 = vmatprep.subr.mxu0 0.0
    %487 = vmatpush1.msra.mxu0 0.0
    %488 = vmatprep.subr.mxu0 0.0
    %489 = vmatpush1.msra.mxu0 0.0
    %490 = vmatprep.subr.mxu0 0.0
    %491 = vmatpush1.msra.mxu0 0.0
    %492 = vmatprep.subr.mxu0 0.0
    %493 = vmatpush1.msra.mxu0 0.0
    %494 = vmatprep.subr.mxu0 0.0
    %495 = vmatpush1.msra.mxu0 0.0
    %496 = vmatprep.subr.mxu0 0.0
    %497 = vmatpush1.msra.mxu0 0.0
    %498 = vmatprep.subr.mxu0 0.0
    %499 = vmatpush1.msra.mxu0 0.0
    %500 = vmatprep.subr.mxu0 0.0
    %501 = vmatpush1.msra.mxu0 0.0
    %502 = vmatprep.subr.mxu0 0.0
    %503 = vmatpush1.msra.mxu0 0.0
    %504 = vmatprep.subr.mxu0 0.0
    %505 = vmatpush1.msra.mxu0 0.0
    %506 = vmatprep.subr.mxu0 0.0
    %507 = vmatpush1.msra.mxu0 0.0
    %508 = vmatprep.subr.mxu0 0.0
    %509 = vmatpush1.msra.mxu0 0.0
    %510 = vmatprep.subr.mxu0 0.0
    %511 = vmatpush1.msra.mxu0 0.0
    %512 = vmatprep.subr.mxu0 0.0
    %513 = vmatpush1.msra.mxu0 0.0
    %514 = vmatprep.subr.mxu0 0.0
    %515 = vmatpush1.msra.mxu0 0.0
    %516 = vmatprep.subr.mxu0 0.0
    %517 = vmatpush1.msra.mxu0 0.0
    %518 = vmatprep.subr.mxu0 0.0
    %519 = vmatpush1.msra.mxu0 0.0
    %520 = vmatprep.subr.mxu0 0.0
    %521 = vmatpush1.msra.mxu0 0.0
    %522 = vmatprep.subr.mxu0 0.0
    %523 = vmatpush1.msra.mxu0 0.0
    %524 = vmatprep.subr.mxu0 0.0
    %525 = vmatpush1.msra.mxu0 0.0
    %526 = vmatprep.subr.mxu0 0.0
    %527 = vmatpush1.msra.mxu0 0.0
    %528 = vmatprep.subr.mxu0 0.0
    %529 = vmatpush1.msra.mxu0 0.0
    %530 = vmatprep.subr.mxu0 0.0
    %531 = vmatpush1.msra.mxu0 0.0
    %532 = vmatprep.subr.mxu0 0.0
    %533 = vmatpush1.msra.mxu0 0.0
    %534 = vmatprep.subr.mxu0 0.0
    %535 = vmatpush1.msra.mxu0 0.0
    %536 = vmatprep.mubr.f32.mxu0 0.0
    %537 = vmatmul.mubr.f32.gmra.mrb[0].mxu0 %v470
    %v538 = vpop.f32.mrb[0].mxu0
    %v539 = vadd.f32 0.0, %v538
    %v540 = vpop.f32.mrb[0].mxu0
    %541 = vdwg.mxu0
    %v542 = vadd.f32 %v464, %v539
    %v543 = vld [vmem:[%s4 + $0x30] sm:$0xff]
    %v544 = vld [vmem:[%s4 + $0x38] sm:$0xff]
    %v546 = vsel %vm320, %v303, 0
    %548 = vmatprep.subr.mxu0 0.0
    %549 = vmatpush1.msra.mxu0 %v543
    %550 = vmatprep.subr.mxu0 0.0
    %551 = vmatpush1.msra.mxu0 %v544
    %552 = vmatprep.subr.mxu0 0.0
    %553 = vmatpush1.msra.mxu0 0.0
    %554 = vmatprep.subr.mxu0 0.0
    %555 = vmatpush1.msra.mxu0 0.0
    %556 = vmatprep.subr.mxu0 0.0
    %557 = vmatpush1.msra.mxu0 0.0
    %558 = vmatprep.subr.mxu0 0.0
    %559 = vmatpush1.msra.mxu0 0.0
    %560 = vmatprep.subr.mxu0 0.0
    %561 = vmatpush1.msra.mxu0 0.0
    %562 = vmatprep.subr.mxu0 0.0
    %563 = vmatpush1.msra.mxu0 0.0
    %564 = vmatprep.subr.mxu0 0.0
    %565 = vmatpush1.msra.mxu0 0.0
    %566 = vmatprep.subr.mxu0 0.0
    %567 = vmatpush1.msra.mxu0 0.0
    %568 = vmatprep.subr.mxu0 0.0
    %569 = vmatpush1.msra.mxu0 0.0
    %570 = vmatprep.subr.mxu0 0.0
    %571 = vmatpush1.msra.mxu0 0.0
    %572 = vmatprep.subr.mxu0 0.0
    %573 = vmatpush1.msra.mxu0 0.0
    %574 = vmatprep.subr.mxu0 0.0
    %575 = vmatpush1.msra.mxu0 0.0
    %576 = vmatprep.subr.mxu0 0.0
    %577 = vmatpush1.msra.mxu0 0.0
    %578 = vmatprep.subr.mxu0 0.0
    %579 = vmatpush1.msra.mxu0 0.0
    %580 = vmatprep.subr.mxu0 0.0
    %581 = vmatpush1.msra.mxu0 0.0
    %582 = vmatprep.subr.mxu0 0.0
    %583 = vmatpush1.msra.mxu0 0.0
    %584 = vmatprep.subr.mxu0 0.0
    %585 = vmatpush1.msra.mxu0 0.0
    %586 = vmatprep.subr.mxu0 0.0
    %587 = vmatpush1.msra.mxu0 0.0
    %588 = vmatprep.subr.mxu0 0.0
    %589 = vmatpush1.msra.mxu0 0.0
    %590 = vmatprep.subr.mxu0 0.0
    %591 = vmatpush1.msra.mxu0 0.0
    %592 = vmatprep.subr.mxu0 0.0
    %593 = vmatpush1.msra.mxu0 0.0
    %594 = vmatprep.subr.mxu0 0.0
    %595 = vmatpush1.msra.mxu0 0.0
    %596 = vmatprep.subr.mxu0 0.0
    %597 = vmatpush1.msra.mxu0 0.0
    %598 = vmatprep.subr.mxu0 0.0
    %599 = vmatpush1.msra.mxu0 0.0
    %600 = vmatprep.subr.mxu0 0.0
    %601 = vmatpush1.msra.mxu0 0.0
    %602 = vmatprep.subr.mxu0 0.0
    %603 = vmatpush1.msra.mxu0 0.0
    %604 = vmatprep.subr.mxu0 0.0
    %605 = vmatpush1.msra.mxu0 0.0
    %606 = vmatprep.subr.mxu0 0.0
    %607 = vmatpush1.msra.mxu0 0.0
    %608 = vmatprep.subr.mxu0 0.0
    %609 = vmatpush1.msra.mxu0 0.0
    %610 = vmatprep.subr.mxu0 0.0
    %611 = vmatpush1.msra.mxu0 0.0
    %612 = vmatprep.mubr.f32.mxu0 0.0
    %613 = vmatmul.mubr.f32.gmra.mrb[0].mxu0 %v546
    %v614 = vpop.f32.mrb[0].mxu0
    %v615 = vadd.f32 0.0, %v614
    %v616 = vpop.f32.mrb[0].mxu0
    %617 = vdwg.mxu0
    %v618 = vadd.f32 %v542, %v615
    %v619 = vld [vmem:[%s4 + $0x40] sm:$0xff]
    %v620 = vld [vmem:[%s4 + $0x48] sm:$0xff]
    %v622 = vsel %vm320, %v304, 0
    %624 = vmatprep.subr.mxu0 0.0
    %625 = vmatpush1.msra.mxu0 %v619
    %626 = vmatprep.subr.mxu0 0.0
    %627 = vmatpush1.msra.mxu0 %v620
    %628 = vmatprep.subr.mxu0 0.0
    %629 = vmatpush1.msra.mxu0 0.0
    %630 = vmatprep.subr.mxu0 0.0
    %631 = vmatpush1.msra.mxu0 0.0
    %632 = vmatprep.subr.mxu0 0.0
    %633 = vmatpush1.msra.mxu0 0.0
    %634 = vmatprep.subr.mxu0 0.0
    %635 = vmatpush1.msra.mxu0 0.0
    %636 = vmatprep.subr.mxu0 0.0
    %637 = vmatpush1.msra.mxu0 0.0
    %638 = vmatprep.subr.mxu0 0.0
    %639 = vmatpush1.msra.mxu0 0.0
    %640 = vmatprep.subr.mxu0 0.0
    %641 = vmatpush1.msra.mxu0 0.0
    %642 = vmatprep.subr.mxu0 0.0
    %643 = vmatpush1.msra.mxu0 0.0
    %644 = vmatprep.subr.mxu0 0.0
    %645 = vmatpush1.msra.mxu0 0.0
    %646 = vmatprep.subr.mxu0 0.0
    %647 = vmatpush1.msra.mxu0 0.0
    %648 = vmatprep.subr.mxu0 0.0
    %649 = vmatpush1.msra.mxu0 0.0
    %650 = vmatprep.subr.mxu0 0.0
    %651 = vmatpush1.msra.mxu0 0.0
    %652 = vmatprep.subr.mxu0 0.0
    %653 = vmatpush1.msra.mxu0 0.0
    %654 = vmatprep.subr.mxu0 0.0
    %655 = vmatpush1.msra.mxu0 0.0
    %656 = vmatprep.subr.mxu0 0.0
    %657 = vmatpush1.msra.mxu0 0.0
    %658 = vmatprep.subr.mxu0 0.0
    %659 = vmatpush1.msra.mxu0 0.0
    %660 = vmatprep.subr.mxu0 0.0
    %661 = vmatpush1.msra.mxu0 0.0
    %662 = vmatprep.subr.mxu0 0.0
    %663 = vmatpush1.msra.mxu0 0.0
    %664 = vmatprep.subr.mxu0 0.0
    %665 = vmatpush1.msra.mxu0 0.0
    %666 = vmatprep.subr.mxu0 0.0
    %667 = vmatpush1.msra.mxu0 0.0
    %668 = vmatprep.subr.mxu0 0.0
    %669 = vmatpush1.msra.mxu0 0.0
    %670 = vmatprep.subr.mxu0 0.0
    %671 = vmatpush1.msra.mxu0 0.0
    %672 = vmatprep.subr.mxu0 0.0
    %673 = vmatpush1.msra.mxu0 0.0
    %674 = vmatprep.subr.mxu0 0.0
    %675 = vmatpush1.msra.mxu0 0.0
    %676 = vmatprep.subr.mxu0 0.0
    %677 = vmatpush1.msra.mxu0 0.0
    %678 = vmatprep.subr.mxu0 0.0
    %679 = vmatpush1.msra.mxu0 0.0
    %680 = vmatprep.subr.mxu0 0.0
    %681 = vmatpush1.msra.mxu0 0.0
    %682 = vmatprep.subr.mxu0 0.0
    %683 = vmatpush1.msra.mxu0 0.0
    %684 = vmatprep.subr.mxu0 0.0
    %685 = vmatpush1.msra.mxu0 0.0
    %686 = vmatprep.subr.mxu0 0.0
    %687 = vmatpush1.msra.mxu0 0.0
    %688 = vmatprep.mubr.f32.mxu0 0.0
    %689 = vmatmul.mubr.f32.gmra.mrb[0].mxu0 %v622
    %v690 = vpop.f32.mrb[0].mxu0
    %v691 = vadd.f32 0.0, %v690
    %v692 = vpop.f32.mrb[0].mxu0
    %693 = vdwg.mxu0
    %v694 = vadd.f32 %v618, %v691
    %v695 = vld [vmem:[%s4 + $0x50] sm:$0xff]
    %v696 = vld [vmem:[%s4 + $0x58] sm:$0xff]
    %v698 = vsel %vm320, %v305, 0
    %700 = vmatprep.subr.mxu0 0.0
    %701 = vmatpush1.msra.mxu0 %v695
    %702 = vmatprep.subr.mxu0 0.0
    %703 = vmatpush1.msra.mxu0 %v696
    %704 = vmatprep.subr.mxu0 0.0
    %705 = vmatpush1.msra.mxu0 0.0
    %706 = vmatprep.subr.mxu0 0.0
    %707 = vmatpush1.msra.mxu0 0.0
    %708 = vmatprep.subr.mxu0 0.0
    %709 = vmatpush1.msra.mxu0 0.0
    %710 = vmatprep.subr.mxu0 0.0
    %711 = vmatpush1.msra.mxu0 0.0
    %712 = vmatprep.subr.mxu0 0.0
    %713 = vmatpush1.msra.mxu0 0.0
    %714 = vmatprep.subr.mxu0 0.0
    %715 = vmatpush1.msra.mxu0 0.0
    %716 = vmatprep.subr.mxu0 0.0
    %717 = vmatpush1.msra.mxu0 0.0
    %718 = vmatprep.subr.mxu0 0.0
    %719 = vmatpush1.msra.mxu0 0.0
    %720 = vmatprep.subr.mxu0 0.0
    %721 = vmatpush1.msra.mxu0 0.0
    %722 = vmatprep.subr.mxu0 0.0
    %723 = vmatpush1.msra.mxu0 0.0
    %724 = vmatprep.subr.mxu0 0.0
    %725 = vmatpush1.msra.mxu0 0.0
    %726 = vmatprep.subr.mxu0 0.0
    %727 = vmatpush1.msra.mxu0 0.0
    %728 = vmatprep.subr.mxu0 0.0
    %729 = vmatpush1.msra.mxu0 0.0
    %730 = vmatprep.subr.mxu0 0.0
    %731 = vmatpush1.msra.mxu0 0.0
    %732 = vmatprep.subr.mxu0 0.0
    %733 = vmatpush1.msra.mxu0 0.0
    %734 = vmatprep.subr.mxu0 0.0
    %735 = vmatpush1.msra.mxu0 0.0
    %736 = vmatprep.subr.mxu0 0.0
    %737 = vmatpush1.msra.mxu0 0.0
    %738 = vmatprep.subr.mxu0 0.0
    %739 = vmatpush1.msra.mxu0 0.0
    %740 = vmatprep.subr.mxu0 0.0
    %741 = vmatpush1.msra.mxu0 0.0
    %742 = vmatprep.subr.mxu0 0.0
    %743 = vmatpush1.msra.mxu0 0.0
    %744 = vmatprep.subr.mxu0 0.0
    %745 = vmatpush1.msra.mxu0 0.0
    %746 = vmatprep.subr.mxu0 0.0
    %747 = vmatpush1.msra.mxu0 0.0
    %748 = vmatprep.subr.mxu0 0.0
    %749 = vmatpush1.msra.mxu0 0.0
    %750 = vmatprep.subr.mxu0 0.0
    %751 = vmatpush1.msra.mxu0 0.0
    %752 = vmatprep.subr.mxu0 0.0
    %753 = vmatpush1.msra.mxu0 0.0
    %754 = vmatprep.subr.mxu0 0.0
    %755 = vmatpush1.msra.mxu0 0.0
    %756 = vmatprep.subr.mxu0 0.0
    %757 = vmatpush1.msra.mxu0 0.0
    %758 = vmatprep.subr.mxu0 0.0
    %759 = vmatpush1.msra.mxu0 0.0
    %760 = vmatprep.subr.mxu0 0.0
    %761 = vmatpush1.msra.mxu0 0.0
    %762 = vmatprep.subr.mxu0 0.0
    %763 = vmatpush1.msra.mxu0 0.0
    %764 = vmatprep.mubr.f32.mxu0 0.0
    %765 = vmatmul.mubr.f32.gmra.mrb[0].mxu0 %v698
    %v766 = vpop.f32.mrb[0].mxu0
    %v767 = vadd.f32 0.0, %v766
    %v768 = vpop.f32.mrb[0].mxu0
    %769 = vdwg.mxu0
    %v770 = vadd.f32 %v694, %v767
    %v771 = vld [vmem:[%s4 + $0x60] sm:$0xff]
    %v772 = vld [vmem:[%s4 + $0x68] sm:$0xff]
    %v774 = vsel %vm320, %v306, 0
    %776 = vmatprep.subr.mxu0 0.0
    %777 = vmatpush1.msra.mxu0 %v771
    %778 = vmatprep.subr.mxu0 0.0
    %779 = vmatpush1.msra.mxu0 %v772
    %780 = vmatprep.subr.mxu0 0.0
    %781 = vmatpush1.msra.mxu0 0.0
    %782 = vmatprep.subr.mxu0 0.0
    %783 = vmatpush1.msra.mxu0 0.0
    %784 = vmatprep.subr.mxu0 0.0
    %785 = vmatpush1.msra.mxu0 0.0
    %786 = vmatprep.subr.mxu0 0.0
    %787 = vmatpush1.msra.mxu0 0.0
    %788 = vmatprep.subr.mxu0 0.0
    %789 = vmatpush1.msra.mxu0 0.0
    %790 = vmatprep.subr.mxu0 0.0
    %791 = vmatpush1.msra.mxu0 0.0
    %792 = vmatprep.subr.mxu0 0.0
    %793 = vmatpush1.msra.mxu0 0.0
    %794 = vmatprep.subr.mxu0 0.0
    %795 = vmatpush1.msra.mxu0 0.0
    %796 = vmatprep.subr.mxu0 0.0
    %797 = vmatpush1.msra.mxu0 0.0
    %798 = vmatprep.subr.mxu0 0.0
    %799 = vmatpush1.msra.mxu0 0.0
    %800 = vmatprep.subr.mxu0 0.0
    %801 = vmatpush1.msra.mxu0 0.0
    %802 = vmatprep.subr.mxu0 0.0
    %803 = vmatpush1.msra.mxu0 0.0
    %804 = vmatprep.subr.mxu0 0.0
    %805 = vmatpush1.msra.mxu0 0.0
    %806 = vmatprep.subr.mxu0 0.0
    %807 = vmatpush1.msra.mxu0 0.0
    %808 = vmatprep.subr.mxu0 0.0
    %809 = vmatpush1.msra.mxu0 0.0
    %810 = vmatprep.subr.mxu0 0.0
    %811 = vmatpush1.msra.mxu0 0.0
    %812 = vmatprep.subr.mxu0 0.0
    %813 = vmatpush1.msra.mxu0 0.0
    %814 = vmatprep.subr.mxu0 0.0
    %815 = vmatpush1.msra.mxu0 0.0
    %816 = vmatprep.subr.mxu0 0.0
    %817 = vmatpush1.msra.mxu0 0.0
    %818 = vmatprep.subr.mxu0 0.0
    %819 = vmatpush1.msra.mxu0 0.0
    %820 = vmatprep.subr.mxu0 0.0
    %821 = vmatpush1.msra.mxu0 0.0
    %822 = vmatprep.subr.mxu0 0.0
    %823 = vmatpush1.msra.mxu0 0.0
    %824 = vmatprep.subr.mxu0 0.0
    %825 = vmatpush1.msra.mxu0 0.0
    %826 = vmatprep.subr.mxu0 0.0
    %827 = vmatpush1.msra.mxu0 0.0
    %828 = vmatprep.subr.mxu0 0.0
    %829 = vmatpush1.msra.mxu0 0.0
    %830 = vmatprep.subr.mxu0 0.0
    %831 = vmatpush1.msra.mxu0 0.0
    %832 = vmatprep.subr.mxu0 0.0
    %833 = vmatpush1.msra.mxu0 0.0
    %834 = vmatprep.subr.mxu0 0.0
    %835 = vmatpush1.msra.mxu0 0.0
    %836 = vmatprep.subr.mxu0 0.0
    %837 = vmatpush1.msra.mxu0 0.0
    %838 = vmatprep.subr.mxu0 0.0
    %839 = vmatpush1.msra.mxu0 0.0
    %840 = vmatprep.mubr.f32.mxu0 0.0
    %841 = vmatmul.mubr.f32.gmra.mrb[0].mxu0 %v774
    %v842 = vpop.f32.mrb[0].mxu0
    %v843 = vadd.f32 0.0, %v842
    %v844 = vpop.f32.mrb[0].mxu0
    %845 = vdwg.mxu0
    %v846 = vadd.f32 %v770, %v843
    %v847 = vld [vmem:[%s4 + $0x70] sm:$0xff]
    %v848 = vld [vmem:[%s4 + $0x78] sm:$0xff]
    %v850 = vsel %vm320, %v307, 0
    %852 = vmatprep.subr.mxu0 0.0
    %853 = vmatpush1.msra.mxu0 %v847
    %854 = vmatprep.subr.mxu0 0.0
    %855 = vmatpush1.msra.mxu0 %v848
    %856 = vmatprep.subr.mxu0 0.0
    %857 = vmatpush1.msra.mxu0 0.0
    %858 = vmatprep.subr.mxu0 0.0
    %859 = vmatpush1.msra.mxu0 0.0
    %860 = vmatprep.subr.mxu0 0.0
    %861 = vmatpush1.msra.mxu0 0.0
    %862 = vmatprep.subr.mxu0 0.0
    %863 = vmatpush1.msra.mxu0 0.0
    %864 = vmatprep.subr.mxu0 0.0
    %865 = vmatpush1.msra.mxu0 0.0
    %866 = vmatprep.subr.mxu0 0.0
    %867 = vmatpush1.msra.mxu0 0.0
    %868 = vmatprep.subr.mxu0 0.0
    %869 = vmatpush1.msra.mxu0 0.0
    %870 = vmatprep.subr.mxu0 0.0
    %871 = vmatpush1.msra.mxu0 0.0
    %872 = vmatprep.subr.mxu0 0.0
    %873 = vmatpush1.msra.mxu0 0.0
    %874 = vmatprep.subr.mxu0 0.0
    %875 = vmatpush1.msra.mxu0 0.0
    %876 = vmatprep.subr.mxu0 0.0
    %877 = vmatpush1.msra.mxu0 0.0
    %878 = vmatprep.subr.mxu0 0.0
    %879 = vmatpush1.msra.mxu0 0.0
    %880 = vmatprep.subr.mxu0 0.0
    %881 = vmatpush1.msra.mxu0 0.0
    %882 = vmatprep.subr.mxu0 0.0
    %883 = vmatpush1.msra.mxu0 0.0
    %884 = vmatprep.subr.mxu0 0.0
    %885 = vmatpush1.msra.mxu0 0.0
    %886 = vmatprep.subr.mxu0 0.0
    %887 = vmatpush1.msra.mxu0 0.0
    %888 = vmatprep.subr.mxu0 0.0
    %889 = vmatpush1.msra.mxu0 0.0
    %890 = vmatprep.subr.mxu0 0.0
    %891 = vmatpush1.msra.mxu0 0.0
    %892 = vmatprep.subr.mxu0 0.0
    %893 = vmatpush1.msra.mxu0 0.0
    %894 = vmatprep.subr.mxu0 0.0
    %895 = vmatpush1.msra.mxu0 0.0
    %896 = vmatprep.subr.mxu0 0.0
    %897 = vmatpush1.msra.mxu0 0.0
    %898 = vmatprep.subr.mxu0 0.0
    %899 = vmatpush1.msra.mxu0 0.0
    %900 = vmatprep.subr.mxu0 0.0
    %901 = vmatpush1.msra.mxu0 0.0
    %902 = vmatprep.subr.mxu0 0.0
    %903 = vmatpush1.msra.mxu0 0.0
    %904 = vmatprep.subr.mxu0 0.0
    %905 = vmatpush1.msra.mxu0 0.0
    %906 = vmatprep.subr.mxu0 0.0
    %907 = vmatpush1.msra.mxu0 0.0
    %908 = vmatprep.subr.mxu0 0.0
    %909 = vmatpush1.msra.mxu0 0.0
    %910 = vmatprep.subr.mxu0 0.0
    %911 = vmatpush1.msra.mxu0 0.0
    %912 = vmatprep.subr.mxu0 0.0
    %913 = vmatpush1.msra.mxu0 0.0
    %914 = vmatprep.subr.mxu0 0.0
    %915 = vmatpush1.msra.mxu0 0.0
    %916 = vmatprep.mubr.f32.mxu0 0.0
    %917 = vmatmul.mubr.f32.gmra.mrb[0].mxu0 %v850
    %v918 = vpop.f32.mrb[0].mxu0
    %v919 = vadd.f32 0.0, %v918
    %v920 = vpop.f32.mrb[0].mxu0
    %921 = vdwg.mxu0
    %v922 = vadd.f32 %v846, %v919
    %v923 = vld [vmem:[%s4 + $0x80] sm:$0xff]
    %v924 = vld [vmem:[%s4 + $0x88] sm:$0xff]
    %v926 = vsel %vm320, %v308, 0
    %928 = vmatprep.subr.mxu0 0.0
    %929 = vmatpush1.msra.mxu0 %v923
    %930 = vmatprep.subr.mxu0 0.0
    %931 = vmatpush1.msra.mxu0 %v924
    %932 = vmatprep.subr.mxu0 0.0
    %933 = vmatpush1.msra.mxu0 0.0
    %934 = vmatprep.subr.mxu0 0.0
    %935 = vmatpush1.msra.mxu0 0.0
    %936 = vmatprep.subr.mxu0 0.0
    %937 = vmatpush1.msra.mxu0 0.0
    %938 = vmatprep.subr.mxu0 0.0
    %939 = vmatpush1.msra.mxu0 0.0
    %940 = vmatprep.subr.mxu0 0.0
    %941 = vmatpush1.msra.mxu0 0.0
    %942 = vmatprep.subr.mxu0 0.0
    %943 = vmatpush1.msra.mxu0 0.0
    %944 = vmatprep.subr.mxu0 0.0
    %945 = vmatpush1.msra.mxu0 0.0
    %946 = vmatprep.subr.mxu0 0.0
    %947 = vmatpush1.msra.mxu0 0.0
    %948 = vmatprep.subr.mxu0 0.0
    %949 = vmatpush1.msra.mxu0 0.0
    %950 = vmatprep.subr.mxu0 0.0
    %951 = vmatpush1.msra.mxu0 0.0
    %952 = vmatprep.subr.mxu0 0.0
    %953 = vmatpush1.msra.mxu0 0.0
    %954 = vmatprep.subr.mxu0 0.0
    %955 = vmatpush1.msra.mxu0 0.0
    %956 = vmatprep.subr.mxu0 0.0
    %957 = vmatpush1.msra.mxu0 0.0
    %958 = vmatprep.subr.mxu0 0.0
    %959 = vmatpush1.msra.mxu0 0.0
    %960 = vmatprep.subr.mxu0 0.0
    %961 = vmatpush1.msra.mxu0 0.0
    %962 = vmatprep.subr.mxu0 0.0
    %963 = vmatpush1.msra.mxu0 0.0
    %964 = vmatprep.subr.mxu0 0.0
    %965 = vmatpush1.msra.mxu0 0.0
    %966 = vmatprep.subr.mxu0 0.0
    %967 = vmatpush1.msra.mxu0 0.0
    %968 = vmatprep.subr.mxu0 0.0
    %969 = vmatpush1.msra.mxu0 0.0
    %970 = vmatprep.subr.mxu0 0.0
    %971 = vmatpush1.msra.mxu0 0.0
    %972 = vmatprep.subr.mxu0 0.0
    %973 = vmatpush1.msra.mxu0 0.0
    %974 = vmatprep.subr.mxu0 0.0
    %975 = vmatpush1.msra.mxu0 0.0
    %976 = vmatprep.subr.mxu0 0.0
    %977 = vmatpush1.msra.mxu0 0.0
    %978 = vmatprep.subr.mxu0 0.0
    %979 = vmatpush1.msra.mxu0 0.0
    %980 = vmatprep.subr.mxu0 0.0
    %981 = vmatpush1.msra.mxu0 0.0
    %982 = vmatprep.subr.mxu0 0.0
    %983 = vmatpush1.msra.mxu0 0.0
    %984 = vmatprep.subr.mxu0 0.0
    %985 = vmatpush1.msra.mxu0 0.0
    %986 = vmatprep.subr.mxu0 0.0
    %987 = vmatpush1.msra.mxu0 0.0
    %988 = vmatprep.subr.mxu0 0.0
    %989 = vmatpush1.msra.mxu0 0.0
    %990 = vmatprep.subr.mxu0 0.0
    %991 = vmatpush1.msra.mxu0 0.0
    %992 = vmatprep.mubr.f32.mxu0 0.0
    %993 = vmatmul.mubr.f32.gmra.mrb[0].mxu0 %v926
    %v994 = vpop.f32.mrb[0].mxu0
    %v995 = vadd.f32 0.0, %v994
    %v996 = vpop.f32.mrb[0].mxu0
    %997 = vdwg.mxu0
    %v998 = vadd.f32 %v922, %v995
    %v999 = vld [vmem:[%s4 + $0x90] sm:$0xff]
    %v1000 = vld [vmem:[%s4 + $0x98] sm:$0xff]
    %v1002 = vsel %vm320, %v309, 0
    %1004 = vmatprep.subr.mxu0 0.0
    %1005 = vmatpush1.msra.mxu0 %v999
    %1006 = vmatprep.subr.mxu0 0.0
    %1007 = vmatpush1.msra.mxu0 %v1000
    %1008 = vmatprep.subr.mxu0 0.0
    %1009 = vmatpush1.msra.mxu0 0.0
    %1010 = vmatprep.subr.mxu0 0.0
    %1011 = vmatpush1.msra.mxu0 0.0
    %1012 = vmatprep.subr.mxu0 0.0
    %1013 = vmatpush1.msra.mxu0 0.0
    %1014 = vmatprep.subr.mxu0 0.0
    %1015 = vmatpush1.msra.mxu0 0.0
    %1016 = vmatprep.subr.mxu0 0.0
    %1017 = vmatpush1.msra.mxu0 0.0
    %1018 = vmatprep.subr.mxu0 0.0
    %1019 = vmatpush1.msra.mxu0 0.0
    %1020 = vmatprep.subr.mxu0 0.0
    %1021 = vmatpush1.msra.mxu0 0.0
    %1022 = vmatprep.subr.mxu0 0.0
    %1023 = vmatpush1.msra.mxu0 0.0
    %1024 = vmatprep.subr.mxu0 0.0
    %1025 = vmatpush1.msra.mxu0 0.0
    %1026 = vmatprep.subr.mxu0 0.0
    %1027 = vmatpush1.msra.mxu0 0.0
    %1028 = vmatprep.subr.mxu0 0.0
    %1029 = vmatpush1.msra.mxu0 0.0
    %1030 = vmatprep.subr.mxu0 0.0
    %1031 = vmatpush1.msra.mxu0 0.0
    %1032 = vmatprep.subr.mxu0 0.0
    %1033 = vmatpush1.msra.mxu0 0.0
    %1034 = vmatprep.subr.mxu0 0.0
    %1035 = vmatpush1.msra.mxu0 0.0
    %1036 = vmatprep.subr.mxu0 0.0
    %1037 = vmatpush1.msra.mxu0 0.0
    %1038 = vmatprep.subr.mxu0 0.0
    %1039 = vmatpush1.msra.mxu0 0.0
    %1040 = vmatprep.subr.mxu0 0.0
    %1041 = vmatpush1.msra.mxu0 0.0
    %1042 = vmatprep.subr.mxu0 0.0
    %1043 = vmatpush1.msra.mxu0 0.0
    %1044 = vmatprep.subr.mxu0 0.0
    %1045 = vmatpush1.msra.mxu0 0.0
    %1046 = vmatprep.subr.mxu0 0.0
    %1047 = vmatpush1.msra.mxu0 0.0
    %1048 = vmatprep.subr.mxu0 0.0
    %1049 = vmatpush1.msra.mxu0 0.0
    %1050 = vmatprep.subr.mxu0 0.0
    %1051 = vmatpush1.msra.mxu0 0.0
    %1052 = vmatprep.subr.mxu0 0.0
    %1053 = vmatpush1.msra.mxu0 0.0
    %1054 = vmatprep.subr.mxu0 0.0
    %1055 = vmatpush1.msra.mxu0 0.0
    %1056 = vmatprep.subr.mxu0 0.0
    %1057 = vmatpush1.msra.mxu0 0.0
    %1058 = vmatprep.subr.mxu0 0.0
    %1059 = vmatpush1.msra.mxu0 0.0
    %1060 = vmatprep.subr.mxu0 0.0
    %1061 = vmatpush1.msra.mxu0 0.0
    %1062 = vmatprep.subr.mxu0 0.0
    %1063 = vmatpush1.msra.mxu0 0.0
    %1064 = vmatprep.subr.mxu0 0.0
    %1065 = vmatpush1.msra.mxu0 0.0
    %1066 = vmatprep.subr.mxu0 0.0
    %1067 = vmatpush1.msra.mxu0 0.0
    %1068 = vmatprep.mubr.f32.mxu0 0.0
    %1069 = vmatmul.mubr.f32.gmra.mrb[0].mxu0 %v1002
    %v1070 = vpop.f32.mrb[0].mxu0
    %v1071 = vadd.f32 0.0, %v1070
    %v1072 = vpop.f32.mrb[0].mxu0
    %1073 = vdwg.mxu0
    %v1074 = vadd.f32 %v998, %v1071
    %v1075 = vld [vmem:[%s4 + $0xa0] sm:$0xff]
    %v1076 = vld [vmem:[%s4 + $0xa8] sm:$0xff]
    %v1078 = vsel %vm320, %v310, 0
    %1080 = vmatprep.subr.mxu0 0.0
    %1081 = vmatpush1.msra.mxu0 %v1075
    %1082 = vmatprep.subr.mxu0 0.0
    %1083 = vmatpush1.msra.mxu0 %v1076
    %1084 = vmatprep.subr.mxu0 0.0
    %1085 = vmatpush1.msra.mxu0 0.0
    %1086 = vmatprep.subr.mxu0 0.0
    %1087 = vmatpush1.msra.mxu0 0.0
    %1088 = vmatprep.subr.mxu0 0.0
    %1089 = vmatpush1.msra.mxu0 0.0
    %1090 = vmatprep.subr.mxu0 0.0
    %1091 = vmatpush1.msra.mxu0 0.0
    %1092 = vmatprep.subr.mxu0 0.0
    %1093 = vmatpush1.msra.mxu0 0.0
    %1094 = vmatprep.subr.mxu0 0.0
    %1095 = vmatpush1.msra.mxu0 0.0
    %1096 = vmatprep.subr.mxu0 0.0
    %1097 = vmatpush1.msra.mxu0 0.0
    %1098 = vmatprep.subr.mxu0 0.0
    %1099 = vmatpush1.msra.mxu0 0.0
    %1100 = vmatprep.subr.mxu0 0.0
    %1101 = vmatpush1.msra.mxu0 0.0
    %1102 = vmatprep.subr.mxu0 0.0
    %1103 = vmatpush1.msra.mxu0 0.0
    %1104 = vmatprep.subr.mxu0 0.0
    %1105 = vmatpush1.msra.mxu0 0.0
    %1106 = vmatprep.subr.mxu0 0.0
    %1107 = vmatpush1.msra.mxu0 0.0
    %1108 = vmatprep.subr.mxu0 0.0
    %1109 = vmatpush1.msra.mxu0 0.0
    %1110 = vmatprep.subr.mxu0 0.0
    %1111 = vmatpush1.msra.mxu0 0.0
    %1112 = vmatprep.subr.mxu0 0.0
    %1113 = vmatpush1.msra.mxu0 0.0
    %1114 = vmatprep.subr.mxu0 0.0
    %1115 = vmatpush1.msra.mxu0 0.0
    %1116 = vmatprep.subr.mxu0 0.0
    %1117 = vmatpush1.msra.mxu0 0.0
    %1118 = vmatprep.subr.mxu0 0.0
    %1119 = vmatpush1.msra.mxu0 0.0
    %1120 = vmatprep.subr.mxu0 0.0
    %1121 = vmatpush1.msra.mxu0 0.0
    %1122 = vmatprep.subr.mxu0 0.0
    %1123 = vmatpush1.msra.mxu0 0.0
    %1124 = vmatprep.subr.mxu0 0.0
    %1125 = vmatpush1.msra.mxu0 0.0
    %1126 = vmatprep.subr.mxu0 0.0
    %1127 = vmatpush1.msra.mxu0 0.0
    %1128 = vmatprep.subr.mxu0 0.0
    %1129 = vmatpush1.msra.mxu0 0.0
    %1130 = vmatprep.subr.mxu0 0.0
    %1131 = vmatpush1.msra.mxu0 0.0
    %1132 = vmatprep.subr.mxu0 0.0
    %1133 = vmatpush1.msra.mxu0 0.0
    %1134 = vmatprep.subr.mxu0 0.0
    %1135 = vmatpush1.msra.mxu0 0.0
    %1136 = vmatprep.subr.mxu0 0.0
    %1137 = vmatpush1.msra.mxu0 0.0
    %1138 = vmatprep.subr.mxu0 0.0
    %1139 = vmatpush1.msra.mxu0 0.0
    %1140 = vmatprep.subr.mxu0 0.0
    %1141 = vmatpush1.msra.mxu0 0.0
    %1142 = vmatprep.subr.mxu0 0.0
    %1143 = vmatpush1.msra.mxu0 0.0
    %1144 = vmatprep.mubr.f32.mxu0 0.0
    %1145 = vmatmul.mubr.f32.gmra.mrb[0].mxu0 %v1078
    %v1146 = vpop.f32.mrb[0].mxu0
    %v1147 = vadd.f32 0.0, %v1146
    %v1148 = vpop.f32.mrb[0].mxu0
    %1149 = vdwg.mxu0
    %v1150 = vadd.f32 %v1074, %v1147
    %v1151 = vld [vmem:[%s4 + $0xb0] sm:$0xff]
    %v1152 = vld [vmem:[%s4 + $0xb8] sm:$0xff]
    %v1154 = vsel %vm320, %v311, 0
    %1156 = vmatprep.subr.mxu0 0.0
    %1157 = vmatpush1.msra.mxu0 %v1151
    %1158 = vmatprep.subr.mxu0 0.0
    %1159 = vmatpush1.msra.mxu0 %v1152
    %1160 = vmatprep.subr.mxu0 0.0
    %1161 = vmatpush1.msra.mxu0 0.0
    %1162 = vmatprep.subr.mxu0 0.0
    %1163 = vmatpush1.msra.mxu0 0.0
    %1164 = vmatprep.subr.mxu0 0.0
    %1165 = vmatpush1.msra.mxu0 0.0
    %1166 = vmatprep.subr.mxu0 0.0
    %1167 = vmatpush1.msra.mxu0 0.0
    %1168 = vmatprep.subr.mxu0 0.0
    %1169 = vmatpush1.msra.mxu0 0.0
    %1170 = vmatprep.subr.mxu0 0.0
    %1171 = vmatpush1.msra.mxu0 0.0
    %1172 = vmatprep.subr.mxu0 0.0
    %1173 = vmatpush1.msra.mxu0 0.0
    %1174 = vmatprep.subr.mxu0 0.0
    %1175 = vmatpush1.msra.mxu0 0.0
    %1176 = vmatprep.subr.mxu0 0.0
    %1177 = vmatpush1.msra.mxu0 0.0
    %1178 = vmatprep.subr.mxu0 0.0
    %1179 = vmatpush1.msra.mxu0 0.0
    %1180 = vmatprep.subr.mxu0 0.0
    %1181 = vmatpush1.msra.mxu0 0.0
    %1182 = vmatprep.subr.mxu0 0.0
    %1183 = vmatpush1.msra.mxu0 0.0
    %1184 = vmatprep.subr.mxu0 0.0
    %1185 = vmatpush1.msra.mxu0 0.0
    %1186 = vmatprep.subr.mxu0 0.0
    %1187 = vmatpush1.msra.mxu0 0.0
    %1188 = vmatprep.subr.mxu0 0.0
    %1189 = vmatpush1.msra.mxu0 0.0
    %1190 = vmatprep.subr.mxu0 0.0
    %1191 = vmatpush1.msra.mxu0 0.0
    %1192 = vmatprep.subr.mxu0 0.0
    %1193 = vmatpush1.msra.mxu0 0.0
    %1194 = vmatprep.subr.mxu0 0.0
    %1195 = vmatpush1.msra.mxu0 0.0
    %1196 = vmatprep.subr.mxu0 0.0
    %1197 = vmatpush1.msra.mxu0 0.0
    %1198 = vmatprep.subr.mxu0 0.0
    %1199 = vmatpush1.msra.mxu0 0.0
    %1200 = vmatprep.subr.mxu0 0.0
    %1201 = vmatpush1.msra.mxu0 0.0
    %1202 = vmatprep.subr.mxu0 0.0
    %1203 = vmatpush1.msra.mxu0 0.0
    %1204 = vmatprep.subr.mxu0 0.0
    %1205 = vmatpush1.msra.mxu0 0.0
    %1206 = vmatprep.subr.mxu0 0.0
    %1207 = vmatpush1.msra.mxu0 0.0
    %1208 = vmatprep.subr.mxu0 0.0
    %1209 = vmatpush1.msra.mxu0 0.0
    %1210 = vmatprep.subr.mxu0 0.0
    %1211 = vmatpush1.msra.mxu0 0.0
    %1212 = vmatprep.subr.mxu0 0.0
    %1213 = vmatpush1.msra.mxu0 0.0
    %1214 = vmatprep.subr.mxu0 0.0
    %1215 = vmatpush1.msra.mxu0 0.0
    %1216 = vmatprep.subr.mxu0 0.0
    %1217 = vmatpush1.msra.mxu0 0.0
    %1218 = vmatprep.subr.mxu0 0.0
    %1219 = vmatpush1.msra.mxu0 0.0
    %1220 = vmatprep.mubr.f32.mxu0 0.0
    %1221 = vmatmul.mubr.f32.gmra.mrb[0].mxu0 %v1154
    %v1222 = vpop.f32.mrb[0].mxu0
    %v1223 = vadd.f32 0.0, %v1222
    %v1224 = vpop.f32.mrb[0].mxu0
    %1225 = vdwg.mxu0
    %v1226 = vadd.f32 %v1150, %v1223
    %v1227 = vld [vmem:[%s4 + $0xc0] sm:$0xff]
    %v1228 = vld [vmem:[%s4 + $0xc8] sm:$0xff]
    %v1230 = vsel %vm320, %v312, 0
    %1232 = vmatprep.subr.mxu0 0.0
    %1233 = vmatpush1.msra.mxu0 %v1227
    %1234 = vmatprep.subr.mxu0 0.0
    %1235 = vmatpush1.msra.mxu0 %v1228
    %1236 = vmatprep.subr.mxu0 0.0
    %1237 = vmatpush1.msra.mxu0 0.0
    %1238 = vmatprep.subr.mxu0 0.0
    %1239 = vmatpush1.msra.mxu0 0.0
    %1240 = vmatprep.subr.mxu0 0.0
    %1241 = vmatpush1.msra.mxu0 0.0
    %1242 = vmatprep.subr.mxu0 0.0
    %1243 = vmatpush1.msra.mxu0 0.0
    %1244 = vmatprep.subr.mxu0 0.0
    %1245 = vmatpush1.msra.mxu0 0.0
    %1246 = vmatprep.subr.mxu0 0.0
    %1247 = vmatpush1.msra.mxu0 0.0
    %1248 = vmatprep.subr.mxu0 0.0
    %1249 = vmatpush1.msra.mxu0 0.0
    %1250 = vmatprep.subr.mxu0 0.0
    %1251 = vmatpush1.msra.mxu0 0.0
    %1252 = vmatprep.subr.mxu0 0.0
    %1253 = vmatpush1.msra.mxu0 0.0
    %1254 = vmatprep.subr.mxu0 0.0
    %1255 = vmatpush1.msra.mxu0 0.0
    %1256 = vmatprep.subr.mxu0 0.0
    %1257 = vmatpush1.msra.mxu0 0.0
    %1258 = vmatprep.subr.mxu0 0.0
    %1259 = vmatpush1.msra.mxu0 0.0
    %1260 = vmatprep.subr.mxu0 0.0
    %1261 = vmatpush1.msra.mxu0 0.0
    %1262 = vmatprep.subr.mxu0 0.0
    %1263 = vmatpush1.msra.mxu0 0.0
    %1264 = vmatprep.subr.mxu0 0.0
    %1265 = vmatpush1.msra.mxu0 0.0
    %1266 = vmatprep.subr.mxu0 0.0
    %1267 = vmatpush1.msra.mxu0 0.0
    %1268 = vmatprep.subr.mxu0 0.0
    %1269 = vmatpush1.msra.mxu0 0.0
    %1270 = vmatprep.subr.mxu0 0.0
    %1271 = vmatpush1.msra.mxu0 0.0
    %1272 = vmatprep.subr.mxu0 0.0
    %1273 = vmatpush1.msra.mxu0 0.0
    %1274 = vmatprep.subr.mxu0 0.0
    %1275 = vmatpush1.msra.mxu0 0.0
    %1276 = vmatprep.subr.mxu0 0.0
    %1277 = vmatpush1.msra.mxu0 0.0
    %1278 = vmatprep.subr.mxu0 0.0
    %1279 = vmatpush1.msra.mxu0 0.0
    %1280 = vmatprep.subr.mxu0 0.0
    %1281 = vmatpush1.msra.mxu0 0.0
    %1282 = vmatprep.subr.mxu0 0.0
    %1283 = vmatpush1.msra.mxu0 0.0
    %1284 = vmatprep.subr.mxu0 0.0
    %1285 = vmatpush1.msra.mxu0 0.0
    %1286 = vmatprep.subr.mxu0 0.0
    %1287 = vmatpush1.msra.mxu0 0.0
    %1288 = vmatprep.subr.mxu0 0.0
    %1289 = vmatpush1.msra.mxu0 0.0
    %1290 = vmatprep.subr.mxu0 0.0
    %1291 = vmatpush1.msra.mxu0 0.0
    %1292 = vmatprep.subr.mxu0 0.0
    %1293 = vmatpush1.msra.mxu0 0.0
    %1294 = vmatprep.subr.mxu0 0.0
    %1295 = vmatpush1.msra.mxu0 0.0
    %1296 = vmatprep.mubr.f32.mxu0 0.0
    %1297 = vmatmul.mubr.f32.gmra.mrb[0].mxu0 %v1230
    %v1298 = vpop.f32.mrb[0].mxu0
    %v1299 = vadd.f32 0.0, %v1298
    %v1300 = vpop.f32.mrb[0].mxu0
    %1301 = vdwg.mxu0
    %v1302 = vadd.f32 %v1226, %v1299
    %v1303 = vld [vmem:[%s4 + $0xd0] sm:$0xff]
    %v1304 = vld [vmem:[%s4 + $0xd8] sm:$0xff]
    %v1306 = vsel %vm320, %v313, 0
    %1308 = vmatprep.subr.mxu0 0.0
    %1309 = vmatpush1.msra.mxu0 %v1303
    %1310 = vmatprep.subr.mxu0 0.0
    %1311 = vmatpush1.msra.mxu0 %v1304
    %1312 = vmatprep.subr.mxu0 0.0
    %1313 = vmatpush1.msra.mxu0 0.0
    %1314 = vmatprep.subr.mxu0 0.0
    %1315 = vmatpush1.msra.mxu0 0.0
    %1316 = vmatprep.subr.mxu0 0.0
    %1317 = vmatpush1.msra.mxu0 0.0
    %1318 = vmatprep.subr.mxu0 0.0
    %1319 = vmatpush1.msra.mxu0 0.0
    %1320 = vmatprep.subr.mxu0 0.0
    %1321 = vmatpush1.msra.mxu0 0.0
    %1322 = vmatprep.subr.mxu0 0.0
    %1323 = vmatpush1.msra.mxu0 0.0
    %1324 = vmatprep.subr.mxu0 0.0
    %1325 = vmatpush1.msra.mxu0 0.0
    %1326 = vmatprep.subr.mxu0 0.0
    %1327 = vmatpush1.msra.mxu0 0.0
    %1328 = vmatprep.subr.mxu0 0.0
    %1329 = vmatpush1.msra.mxu0 0.0
    %1330 = vmatprep.subr.mxu0 0.0
    %1331 = vmatpush1.msra.mxu0 0.0
    %1332 = vmatprep.subr.mxu0 0.0
    %1333 = vmatpush1.msra.mxu0 0.0
    %1334 = vmatprep.subr.mxu0 0.0
    %1335 = vmatpush1.msra.mxu0 0.0
    %1336 = vmatprep.subr.mxu0 0.0
    %1337 = vmatpush1.msra.mxu0 0.0
    %1338 = vmatprep.subr.mxu0 0.0
    %1339 = vmatpush1.msra.mxu0 0.0
    %1340 = vmatprep.subr.mxu0 0.0
    %1341 = vmatpush1.msra.mxu0 0.0
    %1342 = vmatprep.subr.mxu0 0.0
    %1343 = vmatpush1.msra.mxu0 0.0
    %1344 = vmatprep.subr.mxu0 0.0
    %1345 = vmatpush1.msra.mxu0 0.0
    %1346 = vmatprep.subr.mxu0 0.0
    %1347 = vmatpush1.msra.mxu0 0.0
    %1348 = vmatprep.subr.mxu0 0.0
    %1349 = vmatpush1.msra.mxu0 0.0
    %1350 = vmatprep.subr.mxu0 0.0
    %1351 = vmatpush1.msra.mxu0 0.0
    %1352 = vmatprep.subr.mxu0 0.0
    %1353 = vmatpush1.msra.mxu0 0.0
    %1354 = vmatprep.subr.mxu0 0.0
    %1355 = vmatpush1.msra.mxu0 0.0
    %1356 = vmatprep.subr.mxu0 0.0
    %1357 = vmatpush1.msra.mxu0 0.0
    %1358 = vmatprep.subr.mxu0 0.0
    %1359 = vmatpush1.msra.mxu0 0.0
    %1360 = vmatprep.subr.mxu0 0.0
    %1361 = vmatpush1.msra.mxu0 0.0
    %1362 = vmatprep.subr.mxu0 0.0
    %1363 = vmatpush1.msra.mxu0 0.0
    %1364 = vmatprep.subr.mxu0 0.0
    %1365 = vmatpush1.msra.mxu0 0.0
    %1366 = vmatprep.subr.mxu0 0.0
    %1367 = vmatpush1.msra.mxu0 0.0
    %1368 = vmatprep.subr.mxu0 0.0
    %1369 = vmatpush1.msra.mxu0 0.0
    %1370 = vmatprep.subr.mxu0 0.0
    %1371 = vmatpush1.msra.mxu0 0.0
    %1372 = vmatprep.mubr.f32.mxu0 0.0
    %1373 = vmatmul.mubr.f32.gmra.mrb[0].mxu0 %v1306
    %v1374 = vpop.f32.mrb[0].mxu0
    %v1375 = vadd.f32 0.0, %v1374
    %v1376 = vpop.f32.mrb[0].mxu0
    %1377 = vdwg.mxu0
    %v1378 = vadd.f32 %v1302, %v1375
    %v1379 = vld [vmem:[%s4 + $0xe0] sm:$0xff]
    %v1380 = vld [vmem:[%s4 + $0xe8] sm:$0xff]
    %v1382 = vsel %vm320, %v314, 0
    %1384 = vmatprep.subr.mxu0 0.0
    %1385 = vmatpush1.msra.mxu0 %v1379
    %1386 = vmatprep.subr.mxu0 0.0
    %1387 = vmatpush1.msra.mxu0 %v1380
    %1388 = vmatprep.subr.mxu0 0.0
    %1389 = vmatpush1.msra.mxu0 0.0
    %1390 = vmatprep.subr.mxu0 0.0
    %1391 = vmatpush1.msra.mxu0 0.0
    %1392 = vmatprep.subr.mxu0 0.0
    %1393 = vmatpush1.msra.mxu0 0.0
    %1394 = vmatprep.subr.mxu0 0.0
    %1395 = vmatpush1.msra.mxu0 0.0
    %1396 = vmatprep.subr.mxu0 0.0
    %1397 = vmatpush1.msra.mxu0 0.0
    %1398 = vmatprep.subr.mxu0 0.0
    %1399 = vmatpush1.msra.mxu0 0.0
    %1400 = vmatprep.subr.mxu0 0.0
    %1401 = vmatpush1.msra.mxu0 0.0
    %1402 = vmatprep.subr.mxu0 0.0
    %1403 = vmatpush1.msra.mxu0 0.0
    %1404 = vmatprep.subr.mxu0 0.0
    %1405 = vmatpush1.msra.mxu0 0.0
    %1406 = vmatprep.subr.mxu0 0.0
    %1407 = vmatpush1.msra.mxu0 0.0
    %1408 = vmatprep.subr.mxu0 0.0
    %1409 = vmatpush1.msra.mxu0 0.0
    %1410 = vmatprep.subr.mxu0 0.0
    %1411 = vmatpush1.msra.mxu0 0.0
    %1412 = vmatprep.subr.mxu0 0.0
    %1413 = vmatpush1.msra.mxu0 0.0
    %1414 = vmatprep.subr.mxu0 0.0
    %1415 = vmatpush1.msra.mxu0 0.0
    %1416 = vmatprep.subr.mxu0 0.0
    %1417 = vmatpush1.msra.mxu0 0.0
    %1418 = vmatprep.subr.mxu0 0.0
    %1419 = vmatpush1.msra.mxu0 0.0
    %1420 = vmatprep.subr.mxu0 0.0
    %1421 = vmatpush1.msra.mxu0 0.0
    %1422 = vmatprep.subr.mxu0 0.0
    %1423 = vmatpush1.msra.mxu0 0.0
    %1424 = vmatprep.subr.mxu0 0.0
    %1425 = vmatpush1.msra.mxu0 0.0
    %1426 = vmatprep.subr.mxu0 0.0
    %1427 = vmatpush1.msra.mxu0 0.0
    %1428 = vmatprep.subr.mxu0 0.0
    %1429 = vmatpush1.msra.mxu0 0.0
    %1430 = vmatprep.subr.mxu0 0.0
    %1431 = vmatpush1.msra.mxu0 0.0
    %1432 = vmatprep.subr.mxu0 0.0
    %1433 = vmatpush1.msra.mxu0 0.0
    %1434 = vmatprep.subr.mxu0 0.0
    %1435 = vmatpush1.msra.mxu0 0.0
    %1436 = vmatprep.subr.mxu0 0.0
    %1437 = vmatpush1.msra.mxu0 0.0
    %1438 = vmatprep.subr.mxu0 0.0
    %1439 = vmatpush1.msra.mxu0 0.0
    %1440 = vmatprep.subr.mxu0 0.0
    %1441 = vmatpush1.msra.mxu0 0.0
    %1442 = vmatprep.subr.mxu0 0.0
    %1443 = vmatpush1.msra.mxu0 0.0
    %1444 = vmatprep.subr.mxu0 0.0
    %1445 = vmatpush1.msra.mxu0 0.0
    %1446 = vmatprep.subr.mxu0 0.0
    %1447 = vmatpush1.msra.mxu0 0.0
    %1448 = vmatprep.mubr.f32.mxu0 0.0
    %1449 = vmatmul.mubr.f32.gmra.mrb[0].mxu0 %v1382
    %v1450 = vpop.f32.mrb[0].mxu0
    %v1451 = vadd.f32 0.0, %v1450
    %v1452 = vpop.f32.mrb[0].mxu0
    %1453 = vdwg.mxu0
    %v1454 = vadd.f32 %v1378, %v1451
    %v1455 = vld [vmem:[%s4 + $0xf0] sm:$0xff]
    %v1456 = vld [vmem:[%s4 + $0xf8] sm:$0xff]
    %v1458 = vsel %vm320, %v315, 0
    %1460 = vmatprep.subr.mxu0 0.0
    %1461 = vmatpush1.msra.mxu0 %v1455
    %1462 = vmatprep.subr.mxu0 0.0
    %1463 = vmatpush1.msra.mxu0 %v1456
    %1464 = vmatprep.subr.mxu0 0.0
    %1465 = vmatpush1.msra.mxu0 0.0
    %1466 = vmatprep.subr.mxu0 0.0
    %1467 = vmatpush1.msra.mxu0 0.0
    %1468 = vmatprep.subr.mxu0 0.0
    %1469 = vmatpush1.msra.mxu0 0.0
    %1470 = vmatprep.subr.mxu0 0.0
    %1471 = vmatpush1.msra.mxu0 0.0
    %1472 = vmatprep.subr.mxu0 0.0
    %1473 = vmatpush1.msra.mxu0 0.0
    %1474 = vmatprep.subr.mxu0 0.0
    %1475 = vmatpush1.msra.mxu0 0.0
    %1476 = vmatprep.subr.mxu0 0.0
    %1477 = vmatpush1.msra.mxu0 0.0
    %1478 = vmatprep.subr.mxu0 0.0
    %1479 = vmatpush1.msra.mxu0 0.0
    %1480 = vmatprep.subr.mxu0 0.0
    %1481 = vmatpush1.msra.mxu0 0.0
    %1482 = vmatprep.subr.mxu0 0.0
    %1483 = vmatpush1.msra.mxu0 0.0
    %1484 = vmatprep.subr.mxu0 0.0
    %1485 = vmatpush1.msra.mxu0 0.0
    %1486 = vmatprep.subr.mxu0 0.0
    %1487 = vmatpush1.msra.mxu0 0.0
    %1488 = vmatprep.subr.mxu0 0.0
    %1489 = vmatpush1.msra.mxu0 0.0
    %1490 = vmatprep.subr.mxu0 0.0
    %1491 = vmatpush1.msra.mxu0 0.0
    %1492 = vmatprep.subr.mxu0 0.0
    %1493 = vmatpush1.msra.mxu0 0.0
    %1494 = vmatprep.subr.mxu0 0.0
    %1495 = vmatpush1.msra.mxu0 0.0
    %1496 = vmatprep.subr.mxu0 0.0
    %1497 = vmatpush1.msra.mxu0 0.0
    %1498 = vmatprep.subr.mxu0 0.0
    %1499 = vmatpush1.msra.mxu0 0.0
    %1500 = vmatprep.subr.mxu0 0.0
    %1501 = vmatpush1.msra.mxu0 0.0
    %1502 = vmatprep.subr.mxu0 0.0
    %1503 = vmatpush1.msra.mxu0 0.0
    %1504 = vmatprep.subr.mxu0 0.0
    %1505 = vmatpush1.msra.mxu0 0.0
    %1506 = vmatprep.subr.mxu0 0.0
    %1507 = vmatpush1.msra.mxu0 0.0
    %1508 = vmatprep.subr.mxu0 0.0
    %1509 = vmatpush1.msra.mxu0 0.0
    %1510 = vmatprep.subr.mxu0 0.0
    %1511 = vmatpush1.msra.mxu0 0.0
    %1512 = vmatprep.subr.mxu0 0.0
    %1513 = vmatpush1.msra.mxu0 0.0
    %1514 = vmatprep.subr.mxu0 0.0
    %1515 = vmatpush1.msra.mxu0 0.0
    %1516 = vmatprep.subr.mxu0 0.0
    %1517 = vmatpush1.msra.mxu0 0.0
    %1518 = vmatprep.subr.mxu0 0.0
    %1519 = vmatpush1.msra.mxu0 0.0
    %1520 = vmatprep.subr.mxu0 0.0
    %1521 = vmatpush1.msra.mxu0 0.0
    %1522 = vmatprep.subr.mxu0 0.0
    %1523 = vmatpush1.msra.mxu0 0.0
    %1524 = vmatprep.mubr.f32.mxu0 0.0
    %1525 = vmatmul.mubr.f32.gmra.mrb[0].mxu0 %v1458
    %v1526 = vpop.f32.mrb[0].mxu0
    %v1527 = vadd.f32 0.0, %v1526
    %v1528 = vpop.f32.mrb[0].mxu0
    %1529 = vdwg.mxu0
    %v1530 = vadd.f32 %v1454, %v1527
    %v1531 = vld [vmem:[%s5] sm:$0x1]
    %v1533 = vlaneseq
    %v1534 = vshrl.u32 %v1533, 7
    %v1535 = vsub.s32 0, %v1534
    %v1536 = vrot.slane %v1531, %v1535
    %v1538 = vadd.f32 %v1530, %v1536
    %vm1539 = vcmp.ge.f32.partialorder %v1538, 0.0
    %v1540 = vstv %s49
    %v1541 = vmul.f32 %v1540, %v1538
    %v1542 = vsel %vm1539, %v1538, %v1541
    %v1543 = vld [vmem:[%s6] sm:$0xff]
    %v1544 = vld [vmem:[%s6 + $0x8] sm:$0xff]
    %v1545 = vld [vmem:[%s6 + $0x10] sm:$0xff]
    %v1546 = vld [vmem:[%s6 + $0x18] sm:$0xff]
    %v1547 = vld [vmem:[%s6 + $0x20] sm:$0xff]
    %v1548 = vld [vmem:[%s6 + $0x28] sm:$0xff]
    %v1549 = vld [vmem:[%s6 + $0x30] sm:$0xff]
    %v1550 = vld [vmem:[%s6 + $0x38] sm:$0xff]
    %v1551 = vld [vmem:[%s6 + $0x40] sm:$0xff]
    %v1552 = vld [vmem:[%s6 + $0x48] sm:$0xff]
    %v1553 = vld [vmem:[%s6 + $0x50] sm:$0xff]
    %v1554 = vld [vmem:[%s6 + $0x58] sm:$0xff]
    %v1555 = vld [vmem:[%s6 + $0x60] sm:$0xff]
    %v1556 = vld [vmem:[%s6 + $0x68] sm:$0xff]
    %v1557 = vld [vmem:[%s6 + $0x70] sm:$0xff]
    %v1558 = vld [vmem:[%s6 + $0x78] sm:$0xff]
    %v1559 = vld [vmem:[%s6 + $0x80] sm:$0xff]
    %v1560 = vld [vmem:[%s6 + $0x88] sm:$0xff]
    %v1561 = vld [vmem:[%s6 + $0x90] sm:$0xff]
    %v1562 = vld [vmem:[%s6 + $0x98] sm:$0xff]
    %v1563 = vld [vmem:[%s6 + $0xa0] sm:$0xff]
    %v1564 = vld [vmem:[%s6 + $0xa8] sm:$0xff]
    %v1565 = vld [vmem:[%s6 + $0xb0] sm:$0xff]
    %v1566 = vld [vmem:[%s6 + $0xb8] sm:$0xff]
    %v1567 = vld [vmem:[%s6 + $0xc0] sm:$0xff]
    %v1568 = vld [vmem:[%s6 + $0xc8] sm:$0xff]
    %v1569 = vld [vmem:[%s6 + $0xd0] sm:$0xff]
    %v1570 = vld [vmem:[%s6 + $0xd8] sm:$0xff]
    %v1571 = vld [vmem:[%s6 + $0xe0] sm:$0xff]
    %v1572 = vld [vmem:[%s6 + $0xe8] sm:$0xff]
    %v1573 = vld [vmem:[%s6 + $0xf0] sm:$0xff]
    %v1574 = vld [vmem:[%s6 + $0xf8] sm:$0xff]
    %v1576 = vrot.slane %v1542, 2
    %vm1577 = vcmask 261120
    %v1578 = vsel %vm1577, %v1576, 0
    %1580 = vmatprep.subr.mxu0 %v1560
    %1581 = vmatpush1.msra.mxu0 %v1559
    %1582 = vmatprep.subr.mxu0 %v1564
    %1583 = vmatpush1.msra.mxu0 %v1563
    %1584 = vmatprep.subr.mxu0 %v1568
    %1585 = vmatpush1.msra.mxu0 %v1567
    %1586 = vmatprep.subr.mxu0 %v1572
    %1587 = vmatpush1.msra.mxu0 %v1571
    %1588 = vmatprep.subr.mxu0 0.0
    %1589 = vmatpush1.msra.mxu0 0.0
    %1590 = vmatprep.subr.mxu0 0.0
    %1591 = vmatpush1.msra.mxu0 0.0
    %1592 = vmatprep.subr.mxu0 0.0
    %1593 = vmatpush1.msra.mxu0 0.0
    %1594 = vmatprep.subr.mxu0 0.0
    %1595 = vmatpush1.msra.mxu0 0.0
    %1596 = vmatprep.subr.mxu0 0.0
    %1597 = vmatpush1.msra.mxu0 0.0
    %1598 = vmatprep.subr.mxu0 0.0
    %1599 = vmatpush1.msra.mxu0 0.0
    %1600 = vmatprep.subr.mxu0 0.0
    %1601 = vmatpush1.msra.mxu0 0.0
    %1602 = vmatprep.subr.mxu0 0.0
    %1603 = vmatpush1.msra.mxu0 0.0
    %1604 = vmatprep.subr.mxu0 0.0
    %1605 = vmatpush1.msra.mxu0 0.0
    %1606 = vmatprep.subr.mxu0 0.0
    %1607 = vmatpush1.msra.mxu0 0.0
    %1608 = vmatprep.subr.mxu0 0.0
    %1609 = vmatpush1.msra.mxu0 0.0
    %1610 = vmatprep.subr.mxu0 0.0
    %1611 = vmatpush1.msra.mxu0 0.0
    %1612 = vmatprep.subr.mxu0 0.0
    %1613 = vmatpush1.msra.mxu0 0.0
    %1614 = vmatprep.subr.mxu0 0.0
    %1615 = vmatpush1.msra.mxu0 0.0
    %1616 = vmatprep.subr.mxu0 0.0
    %1617 = vmatpush1.msra.mxu0 0.0
    %1618 = vmatprep.subr.mxu0 0.0
    %1619 = vmatpush1.msra.mxu0 0.0
    %1620 = vmatprep.subr.mxu0 0.0
    %1621 = vmatpush1.msra.mxu0 0.0
    %1622 = vmatprep.subr.mxu0 0.0
    %1623 = vmatpush1.msra.mxu0 0.0
    %1624 = vmatprep.subr.mxu0 0.0
    %1625 = vmatpush1.msra.mxu0 0.0
    %1626 = vmatprep.subr.mxu0 0.0
    %1627 = vmatpush1.msra.mxu0 0.0
    %1628 = vmatprep.subr.mxu0 0.0
    %1629 = vmatpush1.msra.mxu0 0.0
    %1630 = vmatprep.subr.mxu0 0.0
    %1631 = vmatpush1.msra.mxu0 0.0
    %1632 = vmatprep.subr.mxu0 0.0
    %1633 = vmatpush1.msra.mxu0 0.0
    %1634 = vmatprep.subr.mxu0 0.0
    %1635 = vmatpush1.msra.mxu0 0.0
    %1636 = vmatprep.subr.mxu0 0.0
    %1637 = vmatpush1.msra.mxu0 0.0
    %1638 = vmatprep.subr.mxu0 0.0
    %1639 = vmatpush1.msra.mxu0 0.0
    %1640 = vmatprep.subr.mxu0 0.0
    %1641 = vmatpush1.msra.mxu0 0.0
    %1642 = vmatprep.subr.mxu0 0.0
    %1643 = vmatpush1.msra.mxu0 0.0
    %1644 = vmatprep.mubr.f32.mxu0 0.0
    %1645 = vmatmul.mubr.f32.gmra.mrb[0].mxu0 %v1578
    %v1646 = vpop.f32.mrb[0].mxu0
    %v1647 = vadd.f32 0.0, %v1646
    %v1648 = vpop.f32.mrb[0].mxu0
    %v1649 = vadd.f32 0.0, %v1648
    %1650 = vdwg.mxu0
    %1651 = vmatprep.subr.mxu0 %v1562
    %1652 = vmatpush1.msra.mxu0 %v1561
    %1653 = vmatprep.subr.mxu0 %v1566
    %1654 = vmatpush1.msra.mxu0 %v1565
    %1655 = vmatprep.subr.mxu0 %v1570
    %1656 = vmatpush1.msra.mxu0 %v1569
    %1657 = vmatprep.subr.mxu0 %v1574
    %1658 = vmatpush1.msra.mxu0 %v1573
    %1659 = vmatprep.subr.mxu0 0.0
    %1660 = vmatpush1.msra.mxu0 0.0
    %1661 = vmatprep.subr.mxu0 0.0
    %1662 = vmatpush1.msra.mxu0 0.0
    %1663 = vmatprep.subr.mxu0 0.0
    %1664 = vmatpush1.msra.mxu0 0.0
    %1665 = vmatprep.subr.mxu0 0.0
    %1666 = vmatpush1.msra.mxu0 0.0
    %1667 = vmatprep.subr.mxu0 0.0
    %1668 = vmatpush1.msra.mxu0 0.0
    %1669 = vmatprep.subr.mxu0 0.0
    %1670 = vmatpush1.msra.mxu0 0.0
    %1671 = vmatprep.subr.mxu0 0.0
    %1672 = vmatpush1.msra.mxu0 0.0
    %1673 = vmatprep.subr.mxu0 0.0
    %1674 = vmatpush1.msra.mxu0 0.0
    %1675 = vmatprep.subr.mxu0 0.0
    %1676 = vmatpush1.msra.mxu0 0.0
    %1677 = vmatprep.subr.mxu0 0.0
    %1678 = vmatpush1.msra.mxu0 0.0
    %1679 = vmatprep.subr.mxu0 0.0
    %1680 = vmatpush1.msra.mxu0 0.0
    %1681 = vmatprep.subr.mxu0 0.0
    %1682 = vmatpush1.msra.mxu0 0.0
    %1683 = vmatprep.subr.mxu0 0.0
    %1684 = vmatpush1.msra.mxu0 0.0
    %1685 = vmatprep.subr.mxu0 0.0
    %1686 = vmatpush1.msra.mxu0 0.0
    %1687 = vmatprep.subr.mxu0 0.0
    %1688 = vmatpush1.msra.mxu0 0.0
    %1689 = vmatprep.subr.mxu0 0.0
    %1690 = vmatpush1.msra.mxu0 0.0
    %1691 = vmatprep.subr.mxu0 0.0
    %1692 = vmatpush1.msra.mxu0 0.0
    %1693 = vmatprep.subr.mxu0 0.0
    %1694 = vmatpush1.msra.mxu0 0.0
    %1695 = vmatprep.subr.mxu0 0.0
    %1696 = vmatpush1.msra.mxu0 0.0
    %1697 = vmatprep.subr.mxu0 0.0
    %1698 = vmatpush1.msra.mxu0 0.0
    %1699 = vmatprep.subr.mxu0 0.0
    %1700 = vmatpush1.msra.mxu0 0.0
    %1701 = vmatprep.subr.mxu0 0.0
    %1702 = vmatpush1.msra.mxu0 0.0
    %1703 = vmatprep.subr.mxu0 0.0
    %1704 = vmatpush1.msra.mxu0 0.0
    %1705 = vmatprep.subr.mxu0 0.0
    %1706 = vmatpush1.msra.mxu0 0.0
    %1707 = vmatprep.subr.mxu0 0.0
    %1708 = vmatpush1.msra.mxu0 0.0
    %1709 = vmatprep.subr.mxu0 0.0
    %1710 = vmatpush1.msra.mxu0 0.0
    %1711 = vmatprep.subr.mxu0 0.0
    %1712 = vmatpush1.msra.mxu0 0.0
    %1713 = vmatprep.subr.mxu0 0.0
    %1714 = vmatpush1.msra.mxu0 0.0
    %1715 = vmatprep.mubr.f32.mxu0 0.0
    %1716 = vmatmul.mubr.f32.gmra.mrb[0].mxu0 %v1578
    %v1717 = vpop.f32.mrb[0].mxu0
    %v1718 = vadd.f32 0.0, %v1717
    %v1719 = vpop.f32.mrb[0].mxu0
    %v1720 = vadd.f32 0.0, %v1719
    %1721 = vdwg.mxu0
    %v1722 = vsel %vm1577, %v1542, 0
    %1724 = vmatprep.subr.mxu0 %v1544
    %1725 = vmatpush1.msra.mxu0 %v1543
    %1726 = vmatprep.subr.mxu0 %v1548
    %1727 = vmatpush1.msra.mxu0 %v1547
    %1728 = vmatprep.subr.mxu0 %v1552
    %1729 = vmatpush1.msra.mxu0 %v1551
    %1730 = vmatprep.subr.mxu0 %v1556
    %1731 = vmatpush1.msra.mxu0 %v1555
    %1732 = vmatprep.subr.mxu0 0.0
    %1733 = vmatpush1.msra.mxu0 0.0
    %1734 = vmatprep.subr.mxu0 0.0
    %1735 = vmatpush1.msra.mxu0 0.0
    %1736 = vmatprep.subr.mxu0 0.0
    %1737 = vmatpush1.msra.mxu0 0.0
    %1738 = vmatprep.subr.mxu0 0.0
    %1739 = vmatpush1.msra.mxu0 0.0
    %1740 = vmatprep.subr.mxu0 0.0
    %1741 = vmatpush1.msra.mxu0 0.0
    %1742 = vmatprep.subr.mxu0 0.0
    %1743 = vmatpush1.msra.mxu0 0.0
    %1744 = vmatprep.subr.mxu0 0.0
    %1745 = vmatpush1.msra.mxu0 0.0
    %1746 = vmatprep.subr.mxu0 0.0
    %1747 = vmatpush1.msra.mxu0 0.0
    %1748 = vmatprep.subr.mxu0 0.0
    %1749 = vmatpush1.msra.mxu0 0.0
    %1750 = vmatprep.subr.mxu0 0.0
    %1751 = vmatpush1.msra.mxu0 0.0
    %1752 = vmatprep.subr.mxu0 0.0
    %1753 = vmatpush1.msra.mxu0 0.0
    %1754 = vmatprep.subr.mxu0 0.0
    %1755 = vmatpush1.msra.mxu0 0.0
    %1756 = vmatprep.subr.mxu0 0.0
    %1757 = vmatpush1.msra.mxu0 0.0
    %1758 = vmatprep.subr.mxu0 0.0
    %1759 = vmatpush1.msra.mxu0 0.0
    %1760 = vmatprep.subr.mxu0 0.0
    %1761 = vmatpush1.msra.mxu0 0.0
    %1762 = vmatprep.subr.mxu0 0.0
    %1763 = vmatpush1.msra.mxu0 0.0
    %1764 = vmatprep.subr.mxu0 0.0
    %1765 = vmatpush1.msra.mxu0 0.0
    %1766 = vmatprep.subr.mxu0 0.0
    %1767 = vmatpush1.msra.mxu0 0.0
    %1768 = vmatprep.subr.mxu0 0.0
    %1769 = vmatpush1.msra.mxu0 0.0
    %1770 = vmatprep.subr.mxu0 0.0
    %1771 = vmatpush1.msra.mxu0 0.0
    %1772 = vmatprep.subr.mxu0 0.0
    %1773 = vmatpush1.msra.mxu0 0.0
    %1774 = vmatprep.subr.mxu0 0.0
    %1775 = vmatpush1.msra.mxu0 0.0
    %1776 = vmatprep.subr.mxu0 0.0
    %1777 = vmatpush1.msra.mxu0 0.0
    %1778 = vmatprep.subr.mxu0 0.0
    %1779 = vmatpush1.msra.mxu0 0.0
    %1780 = vmatprep.subr.mxu0 0.0
    %1781 = vmatpush1.msra.mxu0 0.0
    %1782 = vmatprep.subr.mxu0 0.0
    %1783 = vmatpush1.msra.mxu0 0.0
    %1784 = vmatprep.subr.mxu0 0.0
    %1785 = vmatpush1.msra.mxu0 0.0
    %1786 = vmatprep.subr.mxu0 0.0
    %1787 = vmatpush1.msra.mxu0 0.0
    %1788 = vmatprep.mubr.f32.mxu0 0.0
    %1789 = vmatmul.mubr.f32.gmra.mrb[0].mxu0 %v1722
    %v1790 = vpop.f32.mrb[0].mxu0
    %v1791 = vadd.f32 %v1647, %v1790
    %v1792 = vpop.f32.mrb[0].mxu0
    %v1793 = vadd.f32 %v1649, %v1792
    %1794 = vdwg.mxu0
    %1795 = vmatprep.subr.mxu0 %v1546
    %1796 = vmatpush1.msra.mxu0 %v1545
    %1797 = vmatprep.subr.mxu0 %v1550
    %1798 = vmatpush1.msra.mxu0 %v1549
    %1799 = vmatprep.subr.mxu0 %v1554
    %1800 = vmatpush1.msra.mxu0 %v1553
    %1801 = vmatprep.subr.mxu0 %v1558
    %1802 = vmatpush1.msra.mxu0 %v1557
    %1803 = vmatprep.subr.mxu0 0.0
    %1804 = vmatpush1.msra.mxu0 0.0
    %1805 = vmatprep.subr.mxu0 0.0
    %1806 = vmatpush1.msra.mxu0 0.0
    %1807 = vmatprep.subr.mxu0 0.0
    %1808 = vmatpush1.msra.mxu0 0.0
    %1809 = vmatprep.subr.mxu0 0.0
    %1810 = vmatpush1.msra.mxu0 0.0
    %1811 = vmatprep.subr.mxu0 0.0
    %1812 = vmatpush1.msra.mxu0 0.0
    %1813 = vmatprep.subr.mxu0 0.0
    %1814 = vmatpush1.msra.mxu0 0.0
    %1815 = vmatprep.subr.mxu0 0.0
    %1816 = vmatpush1.msra.mxu0 0.0
    %1817 = vmatprep.subr.mxu0 0.0
    %1818 = vmatpush1.msra.mxu0 0.0
    %1819 = vmatprep.subr.mxu0 0.0
    %1820 = vmatpush1.msra.mxu0 0.0
    %1821 = vmatprep.subr.mxu0 0.0
    %1822 = vmatpush1.msra.mxu0 0.0
    %1823 = vmatprep.subr.mxu0 0.0
    %1824 = vmatpush1.msra.mxu0 0.0
    %1825 = vmatprep.subr.mxu0 0.0
    %1826 = vmatpush1.msra.mxu0 0.0
    %1827 = vmatprep.subr.mxu0 0.0
    %1828 = vmatpush1.msra.mxu0 0.0
    %1829 = vmatprep.subr.mxu0 0.0
    %1830 = vmatpush1.msra.mxu0 0.0
    %1831 = vmatprep.subr.mxu0 0.0
    %1832 = vmatpush1.msra.mxu0 0.0
    %1833 = vmatprep.subr.mxu0 0.0
    %1834 = vmatpush1.msra.mxu0 0.0
    %1835 = vmatprep.subr.mxu0 0.0
    %1836 = vmatpush1.msra.mxu0 0.0
    %1837 = vmatprep.subr.mxu0 0.0
    %1838 = vmatpush1.msra.mxu0 0.0
    %1839 = vmatprep.subr.mxu0 0.0
    %1840 = vmatpush1.msra.mxu0 0.0
    %1841 = vmatprep.subr.mxu0 0.0
    %1842 = vmatpush1.msra.mxu0 0.0
    %1843 = vmatprep.subr.mxu0 0.0
    %1844 = vmatpush1.msra.mxu0 0.0
    %1845 = vmatprep.subr.mxu0 0.0
    %1846 = vmatpush1.msra.mxu0 0.0
    %1847 = vmatprep.subr.mxu0 0.0
    %1848 = vmatpush1.msra.mxu0 0.0
    %1849 = vmatprep.subr.mxu0 0.0
    %1850 = vmatpush1.msra.mxu0 0.0
    %1851 = vmatprep.subr.mxu0 0.0
    %1852 = vmatpush1.msra.mxu0 0.0
    %1853 = vmatprep.subr.mxu0 0.0
    %1854 = vmatpush1.msra.mxu0 0.0
    %1855 = vmatprep.subr.mxu0 0.0
    %1856 = vmatpush1.msra.mxu0 0.0
    %1857 = vmatprep.subr.mxu0 0.0
    %1858 = vmatpush1.msra.mxu0 0.0
    %1859 = vmatprep.mubr.f32.mxu0 0.0
    %1860 = vmatmul.mubr.f32.gmra.mrb[0].mxu0 %v1722
    %v1861 = vpop.f32.mrb[0].mxu0
    %v1862 = vadd.f32 %v1718, %v1861
    %v1863 = vpop.f32.mrb[0].mxu0
    %v1864 = vadd.f32 %v1720, %v1863
    %1865 = vdwg.mxu0
    %v1866 = vld [vmem:[%s6 + $0x100] sm:$0xff]
    %v1867 = vld [vmem:[%s6 + $0x108] sm:$0xff]
    %v1868 = vld [vmem:[%s6 + $0x110] sm:$0xff]
    %v1869 = vld [vmem:[%s6 + $0x118] sm:$0xff]
    %v1870 = vld [vmem:[%s6 + $0x120] sm:$0xff]
    %v1871 = vld [vmem:[%s6 + $0x128] sm:$0xff]
    %v1872 = vld [vmem:[%s6 + $0x130] sm:$0xff]
    %v1873 = vld [vmem:[%s6 + $0x138] sm:$0xff]
    %v1874 = vld [vmem:[%s6 + $0x140] sm:$0xff]
    %v1875 = vld [vmem:[%s6 + $0x148] sm:$0xff]
    %v1876 = vld [vmem:[%s6 + $0x150] sm:$0xff]
    %v1877 = vld [vmem:[%s6 + $0x158] sm:$0xff]
    %v1878 = vld [vmem:[%s6 + $0x160] sm:$0xff]
    %v1879 = vld [vmem:[%s6 + $0x168] sm:$0xff]
    %v1880 = vld [vmem:[%s6 + $0x170] sm:$0xff]
    %v1881 = vld [vmem:[%s6 + $0x178] sm:$0xff]
    %v1882 = vrot.slane %v1542, 4
    %v1883 = vsel %vm1577, %v1882, 0
    %1885 = vmatprep.subr.mxu0 %v1867
    %1886 = vmatpush1.msra.mxu0 %v1866
    %1887 = vmatprep.subr.mxu0 %v1871
    %1888 = vmatpush1.msra.mxu0 %v1870
    %1889 = vmatprep.subr.mxu0 %v1875
    %1890 = vmatpush1.msra.mxu0 %v1874
    %1891 = vmatprep.subr.mxu0 %v1879
    %1892 = vmatpush1.msra.mxu0 %v1878
    %1893 = vmatprep.subr.mxu0 0.0
    %1894 = vmatpush1.msra.mxu0 0.0
    %1895 = vmatprep.subr.mxu0 0.0
    %1896 = vmatpush1.msra.mxu0 0.0
    %1897 = vmatprep.subr.mxu0 0.0
    %1898 = vmatpush1.msra.mxu0 0.0
    %1899 = vmatprep.subr.mxu0 0.0
    %1900 = vmatpush1.msra.mxu0 0.0
    %1901 = vmatprep.subr.mxu0 0.0
    %1902 = vmatpush1.msra.mxu0 0.0
    %1903 = vmatprep.subr.mxu0 0.0
    %1904 = vmatpush1.msra.mxu0 0.0
    %1905 = vmatprep.subr.mxu0 0.0
    %1906 = vmatpush1.msra.mxu0 0.0
    %1907 = vmatprep.subr.mxu0 0.0
    %1908 = vmatpush1.msra.mxu0 0.0
    %1909 = vmatprep.subr.mxu0 0.0
    %1910 = vmatpush1.msra.mxu0 0.0
    %1911 = vmatprep.subr.mxu0 0.0
    %1912 = vmatpush1.msra.mxu0 0.0
    %1913 = vmatprep.subr.mxu0 0.0
    %1914 = vmatpush1.msra.mxu0 0.0
    %1915 = vmatprep.subr.mxu0 0.0
    %1916 = vmatpush1.msra.mxu0 0.0
    %1917 = vmatprep.subr.mxu0 0.0
    %1918 = vmatpush1.msra.mxu0 0.0
    %1919 = vmatprep.subr.mxu0 0.0
    %1920 = vmatpush1.msra.mxu0 0.0
    %1921 = vmatprep.subr.mxu0 0.0
    %1922 = vmatpush1.msra.mxu0 0.0
    %1923 = vmatprep.subr.mxu0 0.0
    %1924 = vmatpush1.msra.mxu0 0.0
    %1925 = vmatprep.subr.mxu0 0.0
    %1926 = vmatpush1.msra.mxu0 0.0
    %1927 = vmatprep.subr.mxu0 0.0
    %1928 = vmatpush1.msra.mxu0 0.0
    %1929 = vmatprep.subr.mxu0 0.0
    %1930 = vmatpush1.msra.mxu0 0.0
    %1931 = vmatprep.subr.mxu0 0.0
    %1932 = vmatpush1.msra.mxu0 0.0
    %1933 = vmatprep.subr.mxu0 0.0
    %1934 = vmatpush1.msra.mxu0 0.0
    %1935 = vmatprep.subr.mxu0 0.0
    %1936 = vmatpush1.msra.mxu0 0.0
    %1937 = vmatprep.subr.mxu0 0.0
    %1938 = vmatpush1.msra.mxu0 0.0
    %1939 = vmatprep.subr.mxu0 0.0
    %1940 = vmatpush1.msra.mxu0 0.0
    %1941 = vmatprep.subr.mxu0 0.0
    %1942 = vmatpush1.msra.mxu0 0.0
    %1943 = vmatprep.subr.mxu0 0.0
    %1944 = vmatpush1.msra.mxu0 0.0
    %1945 = vmatprep.subr.mxu0 0.0
    %1946 = vmatpush1.msra.mxu0 0.0
    %1947 = vmatprep.subr.mxu0 0.0
    %1948 = vmatpush1.msra.mxu0 0.0
    %1949 = vmatprep.mubr.f32.mxu0 0.0
    %1950 = vmatmul.mubr.f32.gmra.mrb[0].mxu0 %v1883
    %v1951 = vpop.f32.mrb[0].mxu0
    %v1952 = vadd.f32 0.0, %v1951
    %v1953 = vpop.f32.mrb[0].mxu0
    %v1954 = vadd.f32 0.0, %v1953
    %1955 = vdwg.mxu0
    %1956 = vmatprep.subr.mxu0 %v1869
    %1957 = vmatpush1.msra.mxu0 %v1868
    %1958 = vmatprep.subr.mxu0 %v1873
    %1959 = vmatpush1.msra.mxu0 %v1872
    %1960 = vmatprep.subr.mxu0 %v1877
    %1961 = vmatpush1.msra.mxu0 %v1876
    %1962 = vmatprep.subr.mxu0 %v1881
    %1963 = vmatpush1.msra.mxu0 %v1880
    %1964 = vmatprep.subr.mxu0 0.0
    %1965 = vmatpush1.msra.mxu0 0.0
    %1966 = vmatprep.subr.mxu0 0.0
    %1967 = vmatpush1.msra.mxu0 0.0
    %1968 = vmatprep.subr.mxu0 0.0
    %1969 = vmatpush1.msra.mxu0 0.0
    %1970 = vmatprep.subr.mxu0 0.0
    %1971 = vmatpush1.msra.mxu0 0.0
    %1972 = vmatprep.subr.mxu0 0.0
    %1973 = vmatpush1.msra.mxu0 0.0
    %1974 = vmatprep.subr.mxu0 0.0
    %1975 = vmatpush1.msra.mxu0 0.0
    %1976 = vmatprep.subr.mxu0 0.0
    %1977 = vmatpush1.msra.mxu0 0.0
    %1978 = vmatprep.subr.mxu0 0.0
    %1979 = vmatpush1.msra.mxu0 0.0
    %1980 = vmatprep.subr.mxu0 0.0
    %1981 = vmatpush1.msra.mxu0 0.0
    %1982 = vmatprep.subr.mxu0 0.0
    %1983 = vmatpush1.msra.mxu0 0.0
    %1984 = vmatprep.subr.mxu0 0.0
    %1985 = vmatpush1.msra.mxu0 0.0
    %1986 = vmatprep.subr.mxu0 0.0
    %1987 = vmatpush1.msra.mxu0 0.0
    %1988 = vmatprep.subr.mxu0 0.0
    %1989 = vmatpush1.msra.mxu0 0.0
    %1990 = vmatprep.subr.mxu0 0.0
    %1991 = vmatpush1.msra.mxu0 0.0
    %1992 = vmatprep.subr.mxu0 0.0
    %1993 = vmatpush1.msra.mxu0 0.0
    %1994 = vmatprep.subr.mxu0 0.0
    %1995 = vmatpush1.msra.mxu0 0.0
    %1996 = vmatprep.subr.mxu0 0.0
    %1997 = vmatpush1.msra.mxu0 0.0
    %1998 = vmatprep.subr.mxu0 0.0
    %1999 = vmatpush1.msra.mxu0 0.0
    %2000 = vmatprep.subr.mxu0 0.0
    %2001 = vmatpush1.msra.mxu0 0.0
    %2002 = vmatprep.subr.mxu0 0.0
    %2003 = vmatpush1.msra.mxu0 0.0
    %2004 = vmatprep.subr.mxu0 0.0
    %2005 = vmatpush1.msra.mxu0 0.0
    %2006 = vmatprep.subr.mxu0 0.0
    %2007 = vmatpush1.msra.mxu0 0.0
    %2008 = vmatprep.subr.mxu0 0.0
    %2009 = vmatpush1.msra.mxu0 0.0
    %2010 = vmatprep.subr.mxu0 0.0
    %2011 = vmatpush1.msra.mxu0 0.0
    %2012 = vmatprep.subr.mxu0 0.0
    %2013 = vmatpush1.msra.mxu0 0.0
    %2014 = vmatprep.subr.mxu0 0.0
    %2015 = vmatpush1.msra.mxu0 0.0
    %2016 = vmatprep.subr.mxu0 0.0
    %2017 = vmatpush1.msra.mxu0 0.0
    %2018 = vmatprep.subr.mxu0 0.0
    %2019 = vmatpush1.msra.mxu0 0.0
    %2020 = vmatprep.mubr.f32.mxu0 0.0
    %2021 = vmatmul.mubr.f32.gmra.mrb[0].mxu0 %v1883
    %v2022 = vpop.f32.mrb[0].mxu0
    %v2023 = vadd.f32 0.0, %v2022
    %v2024 = vpop.f32.mrb[0].mxu0
    %v2025 = vadd.f32 0.0, %v2024
    %2026 = vdwg.mxu0
    %v2027 = vadd.f32 %v1791, %v1952
    %v2028 = vadd.f32 %v1793, %v1954
    %v2029 = vadd.f32 %v1862, %v2023
    %v2030 = vadd.f32 %v1864, %v2025
    %v2031 = vld [vmem:[%s6 + $0x180] sm:$0xff]
    %v2032 = vld [vmem:[%s6 + $0x188] sm:$0xff]
    %v2033 = vld [vmem:[%s6 + $0x190] sm:$0xff]
    %v2034 = vld [vmem:[%s6 + $0x198] sm:$0xff]
    %v2035 = vld [vmem:[%s6 + $0x1a0] sm:$0xff]
    %v2036 = vld [vmem:[%s6 + $0x1a8] sm:$0xff]
    %v2037 = vld [vmem:[%s6 + $0x1b0] sm:$0xff]
    %v2038 = vld [vmem:[%s6 + $0x1b8] sm:$0xff]
    %v2039 = vld [vmem:[%s6 + $0x1c0] sm:$0xff]
    %v2040 = vld [vmem:[%s6 + $0x1c8] sm:$0xff]
    %v2041 = vld [vmem:[%s6 + $0x1d0] sm:$0xff]
    %v2042 = vld [vmem:[%s6 + $0x1d8] sm:$0xff]
    %v2043 = vld [vmem:[%s6 + $0x1e0] sm:$0xff]
    %v2044 = vld [vmem:[%s6 + $0x1e8] sm:$0xff]
    %v2045 = vld [vmem:[%s6 + $0x1f0] sm:$0xff]
    %v2046 = vld [vmem:[%s6 + $0x1f8] sm:$0xff]
    %v2047 = vrot.slane %v1542, 6
    %v2048 = vsel %vm1577, %v2047, 0
    %2050 = vmatprep.subr.mxu0 %v2032
    %2051 = vmatpush1.msra.mxu0 %v2031
    %2052 = vmatprep.subr.mxu0 %v2036
    %2053 = vmatpush1.msra.mxu0 %v2035
    %2054 = vmatprep.subr.mxu0 %v2040
    %2055 = vmatpush1.msra.mxu0 %v2039
    %2056 = vmatprep.subr.mxu0 %v2044
    %2057 = vmatpush1.msra.mxu0 %v2043
    %2058 = vmatprep.subr.mxu0 0.0
    %2059 = vmatpush1.msra.mxu0 0.0
    %2060 = vmatprep.subr.mxu0 0.0
    %2061 = vmatpush1.msra.mxu0 0.0
    %2062 = vmatprep.subr.mxu0 0.0
    %2063 = vmatpush1.msra.mxu0 0.0
    %2064 = vmatprep.subr.mxu0 0.0
    %2065 = vmatpush1.msra.mxu0 0.0
    %2066 = vmatprep.subr.mxu0 0.0
    %2067 = vmatpush1.msra.mxu0 0.0
    %2068 = vmatprep.subr.mxu0 0.0
    %2069 = vmatpush1.msra.mxu0 0.0
    %2070 = vmatprep.subr.mxu0 0.0
    %2071 = vmatpush1.msra.mxu0 0.0
    %2072 = vmatprep.subr.mxu0 0.0
    %2073 = vmatpush1.msra.mxu0 0.0
    %2074 = vmatprep.subr.mxu0 0.0
    %2075 = vmatpush1.msra.mxu0 0.0
    %2076 = vmatprep.subr.mxu0 0.0
    %2077 = vmatpush1.msra.mxu0 0.0
    %2078 = vmatprep.subr.mxu0 0.0
    %2079 = vmatpush1.msra.mxu0 0.0
    %2080 = vmatprep.subr.mxu0 0.0
    %2081 = vmatpush1.msra.mxu0 0.0
    %2082 = vmatprep.subr.mxu0 0.0
    %2083 = vmatpush1.msra.mxu0 0.0
    %2084 = vmatprep.subr.mxu0 0.0
    %2085 = vmatpush1.msra.mxu0 0.0
    %2086 = vmatprep.subr.mxu0 0.0
    %2087 = vmatpush1.msra.mxu0 0.0
    %2088 = vmatprep.subr.mxu0 0.0
    %2089 = vmatpush1.msra.mxu0 0.0
    %2090 = vmatprep.subr.mxu0 0.0
    %2091 = vmatpush1.msra.mxu0 0.0
    %2092 = vmatprep.subr.mxu0 0.0
    %2093 = vmatpush1.msra.mxu0 0.0
    %2094 = vmatprep.subr.mxu0 0.0
    %2095 = vmatpush1.msra.mxu0 0.0
    %2096 = vmatprep.subr.mxu0 0.0
    %2097 = vmatpush1.msra.mxu0 0.0
    %2098 = vmatprep.subr.mxu0 0.0
    %2099 = vmatpush1.msra.mxu0 0.0
    %2100 = vmatprep.subr.mxu0 0.0
    %2101 = vmatpush1.msra.mxu0 0.0
    %2102 = vmatprep.subr.mxu0 0.0
    %2103 = vmatpush1.msra.mxu0 0.0
    %2104 = vmatprep.subr.mxu0 0.0
    %2105 = vmatpush1.msra.mxu0 0.0
    %2106 = vmatprep.subr.mxu0 0.0
    %2107 = vmatpush1.msra.mxu0 0.0
    %2108 = vmatprep.subr.mxu0 0.0
    %2109 = vmatpush1.msra.mxu0 0.0
    %2110 = vmatprep.subr.mxu0 0.0
    %2111 = vmatpush1.msra.mxu0 0.0
    %2112 = vmatprep.subr.mxu0 0.0
    %2113 = vmatpush1.msra.mxu0 0.0
    %2114 = vmatprep.mubr.f32.mxu0 0.0
    %2115 = vmatmul.mubr.f32.gmra.mrb[0].mxu0 %v2048
    %v2116 = vpop.f32.mrb[0].mxu0
    %v2117 = vadd.f32 0.0, %v2116
    %v2118 = vpop.f32.mrb[0].mxu0
    %v2119 = vadd.f32 0.0, %v2118
    %2120 = vdwg.mxu0
    %2121 = vmatprep.subr.mxu0 %v2034
    %2122 = vmatpush1.msra.mxu0 %v2033
    %2123 = vmatprep.subr.mxu0 %v2038
    %2124 = vmatpush1.msra.mxu0 %v2037
    %2125 = vmatprep.subr.mxu0 %v2042
    %2126 = vmatpush1.msra.mxu0 %v2041
    %2127 = vmatprep.subr.mxu0 %v2046
    %2128 = vmatpush1.msra.mxu0 %v2045
    %2129 = vmatprep.subr.mxu0 0.0
    %2130 = vmatpush1.msra.mxu0 0.0
    %2131 = vmatprep.subr.mxu0 0.0
    %2132 = vmatpush1.msra.mxu0 0.0
    %2133 = vmatprep.subr.mxu0 0.0
    %2134 = vmatpush1.msra.mxu0 0.0
    %2135 = vmatprep.subr.mxu0 0.0
    %2136 = vmatpush1.msra.mxu0 0.0
    %2137 = vmatprep.subr.mxu0 0.0
    %2138 = vmatpush1.msra.mxu0 0.0
    %2139 = vmatprep.subr.mxu0 0.0
    %2140 = vmatpush1.msra.mxu0 0.0
    %2141 = vmatprep.subr.mxu0 0.0
    %2142 = vmatpush1.msra.mxu0 0.0
    %2143 = vmatprep.subr.mxu0 0.0
    %2144 = vmatpush1.msra.mxu0 0.0
    %2145 = vmatprep.subr.mxu0 0.0
    %2146 = vmatpush1.msra.mxu0 0.0
    %2147 = vmatprep.subr.mxu0 0.0
    %2148 = vmatpush1.msra.mxu0 0.0
    %2149 = vmatprep.subr.mxu0 0.0
    %2150 = vmatpush1.msra.mxu0 0.0
    %2151 = vmatprep.subr.mxu0 0.0
    %2152 = vmatpush1.msra.mxu0 0.0
    %2153 = vmatprep.subr.mxu0 0.0
    %2154 = vmatpush1.msra.mxu0 0.0
    %2155 = vmatprep.subr.mxu0 0.0
    %2156 = vmatpush1.msra.mxu0 0.0
    %2157 = vmatprep.subr.mxu0 0.0
    %2158 = vmatpush1.msra.mxu0 0.0
    %2159 = vmatprep.subr.mxu0 0.0
    %2160 = vmatpush1.msra.mxu0 0.0
    %2161 = vmatprep.subr.mxu0 0.0
    %2162 = vmatpush1.msra.mxu0 0.0
    %2163 = vmatprep.subr.mxu0 0.0
    %2164 = vmatpush1.msra.mxu0 0.0
    %2165 = vmatprep.subr.mxu0 0.0
    %2166 = vmatpush1.msra.mxu0 0.0
    %2167 = vmatprep.subr.mxu0 0.0
    %2168 = vmatpush1.msra.mxu0 0.0
    %2169 = vmatprep.subr.mxu0 0.0
    %2170 = vmatpush1.msra.mxu0 0.0
    %2171 = vmatprep.subr.mxu0 0.0
    %2172 = vmatpush1.msra.mxu0 0.0
    %2173 = vmatprep.subr.mxu0 0.0
    %2174 = vmatpush1.msra.mxu0 0.0
    %2175 = vmatprep.subr.mxu0 0.0
    %2176 = vmatpush1.msra.mxu0 0.0
    %2177 = vmatprep.subr.mxu0 0.0
    %2178 = vmatpush1.msra.mxu0 0.0
    %2179 = vmatprep.subr.mxu0 0.0
    %2180 = vmatpush1.msra.mxu0 0.0
    %2181 = vmatprep.subr.mxu0 0.0
    %2182 = vmatpush1.msra.mxu0 0.0
    %2183 = vmatprep.subr.mxu0 0.0
    %2184 = vmatpush1.msra.mxu0 0.0
    %2185 = vmatprep.mubr.f32.mxu0 0.0
    %2186 = vmatmul.mubr.f32.gmra.mrb[0].mxu0 %v2048
    %v2187 = vpop.f32.mrb[0].mxu0
    %v2188 = vadd.f32 0.0, %v2187
    %v2189 = vpop.f32.mrb[0].mxu0
    %v2190 = vadd.f32 0.0, %v2189
    %2191 = vdwg.mxu0
    %v2192 = vadd.f32 %v2027, %v2117
    %v2193 = vadd.f32 %v2028, %v2119
    %v2194 = vadd.f32 %v2029, %v2188
    %v2195 = vadd.f32 %v2030, %v2190
    %v2196 = vld [vmem:[%s7] sm:$0xf]
    %v2198 = vlaneseq
    %v2199 = vshrl.u32 %v2198, 7
    %v2200 = vsub.s32 0, %v2199
    %v2201 = vrot.slane %v2196, %v2200
    %v2202 = vlaneseq
    %v2203 = vshrl.u32 %v2202, 7
    %v2204 = vsub.s32 1, %v2203
    %v2205 = vrot.slane %v2196, %v2204
    %v2206 = vlaneseq
    %v2207 = vshrl.u32 %v2206, 7
    %v2208 = vsub.s32 2, %v2207
    %v2209 = vrot.slane %v2196, %v2208
    %v2210 = vlaneseq
    %v2211 = vshrl.u32 %v2210, 7
    %v2212 = vsub.s32 3, %v2211
    %v2213 = vrot.slane %v2196, %v2212
    %v2218 = vadd.f32 %v2192, %v2201
    %v2219 = vadd.f32 %v2193, %v2205
    %v2220 = vadd.f32 %v2194, %v2209
    %v2221 = vadd.f32 %v2195, %v2213
    %vm2222 = vcmp.ge.f32.partialorder %v2218, 0.0
    %vm2223 = vcmp.ge.f32.partialorder %v2219, 0.0
    %vm2224 = vcmp.ge.f32.partialorder %v2220, 0.0
    %vm2225 = vcmp.ge.f32.partialorder %v2221, 0.0
    %v2226 = vstv %s50
    %v2227 = vmul.f32 %v2226, %v2218
    %v2228 = vmul.f32 %v2226, %v2219
    %v2229 = vmul.f32 %v2226, %v2220
    %v2230 = vmul.f32 %v2226, %v2221
    %v2231 = vsel %vm2222, %v2218, %v2227
    %v2232 = vsel %vm2223, %v2219, %v2228
    %v2233 = vsel %vm2224, %v2220, %v2229
    %v2234 = vsel %vm2225, %v2221, %v2230
    %v2235 = vld [vmem:[%s8] sm:$0xff]
    %v2236 = vld [vmem:[%s8 + $0x8] sm:$0xff]
    %v2237 = vld [vmem:[%s8 + $0x10] sm:$0xff]
    %v2238 = vld [vmem:[%s8 + $0x18] sm:$0xff]
    %v2239 = vld [vmem:[%s8 + $0x20] sm:$0xff]
    %v2240 = vld [vmem:[%s8 + $0x28] sm:$0xff]
    %v2241 = vld [vmem:[%s8 + $0x30] sm:$0xff]
    %v2242 = vld [vmem:[%s8 + $0x38] sm:$0xff]
    %v2243 = vld [vmem:[%s8 + $0x40] sm:$0xff]
    %v2244 = vld [vmem:[%s8 + $0x48] sm:$0xff]
    %v2245 = vld [vmem:[%s8 + $0x50] sm:$0xff]
    %v2246 = vld [vmem:[%s8 + $0x58] sm:$0xff]
    %v2247 = vld [vmem:[%s8 + $0x60] sm:$0xff]
    %v2248 = vld [vmem:[%s8 + $0x68] sm:$0xff]
    %v2249 = vld [vmem:[%s8 + $0x70] sm:$0xff]
    %v2250 = vld [vmem:[%s8 + $0x78] sm:$0xff]
    %v2251 = vld [vmem:[%s8 + $0x80] sm:$0xff]
    %v2252 = vld [vmem:[%s8 + $0x88] sm:$0xff]
    %v2253 = vld [vmem:[%s8 + $0x90] sm:$0xff]
    %v2254 = vld [vmem:[%s8 + $0x98] sm:$0xff]
    %v2255 = vld [vmem:[%s8 + $0xa0] sm:$0xff]
    %v2256 = vld [vmem:[%s8 + $0xa8] sm:$0xff]
    %v2257 = vld [vmem:[%s8 + $0xb0] sm:$0xff]
    %v2258 = vld [vmem:[%s8 + $0xb8] sm:$0xff]
    %v2259 = vld [vmem:[%s8 + $0xc0] sm:$0xff]
    %v2260 = vld [vmem:[%s8 + $0xc8] sm:$0xff]
    %v2261 = vld [vmem:[%s8 + $0xd0] sm:$0xff]
    %v2262 = vld [vmem:[%s8 + $0xd8] sm:$0xff]
    %v2263 = vld [vmem:[%s8 + $0xe0] sm:$0xff]
    %v2264 = vld [vmem:[%s8 + $0xe8] sm:$0xff]
    %v2265 = vld [vmem:[%s8 + $0xf0] sm:$0xff]
    %v2266 = vld [vmem:[%s8 + $0xf8] sm:$0xff]
    %v2267 = vld [vmem:[%s8 + $0x100] sm:$0xff]
    %v2268 = vld [vmem:[%s8 + $0x108] sm:$0xff]
    %v2269 = vld [vmem:[%s8 + $0x110] sm:$0xff]
    %v2270 = vld [vmem:[%s8 + $0x118] sm:$0xff]
    %v2271 = vld [vmem:[%s8 + $0x120] sm:$0xff]
    %v2272 = vld [vmem:[%s8 + $0x128] sm:$0xff]
    %v2273 = vld [vmem:[%s8 + $0x130] sm:$0xff]
    %v2274 = vld [vmem:[%s8 + $0x138] sm:$0xff]
    %v2275 = vld [vmem:[%s8 + $0x140] sm:$0xff]
    %v2276 = vld [vmem:[%s8 + $0x148] sm:$0xff]
    %v2277 = vld [vmem:[%s8 + $0x150] sm:$0xff]
    %v2278 = vld [vmem:[%s8 + $0x158] sm:$0xff]
    %v2279 = vld [vmem:[%s8 + $0x160] sm:$0xff]
    %v2280 = vld [vmem:[%s8 + $0x168] sm:$0xff]
    %v2281 = vld [vmem:[%s8 + $0x170] sm:$0xff]
    %v2282 = vld [vmem:[%s8 + $0x178] sm:$0xff]
    %v2283 = vld [vmem:[%s8 + $0x180] sm:$0xff]
    %v2284 = vld [vmem:[%s8 + $0x188] sm:$0xff]
    %v2285 = vld [vmem:[%s8 + $0x190] sm:$0xff]
    %v2286 = vld [vmem:[%s8 + $0x198] sm:$0xff]
    %v2287 = vld [vmem:[%s8 + $0x1a0] sm:$0xff]
    %v2288 = vld [vmem:[%s8 + $0x1a8] sm:$0xff]
    %v2289 = vld [vmem:[%s8 + $0x1b0] sm:$0xff]
    %v2290 = vld [vmem:[%s8 + $0x1b8] sm:$0xff]
    %v2291 = vld [vmem:[%s8 + $0x1c0] sm:$0xff]
    %v2292 = vld [vmem:[%s8 + $0x1c8] sm:$0xff]
    %v2293 = vld [vmem:[%s8 + $0x1d0] sm:$0xff]
    %v2294 = vld [vmem:[%s8 + $0x1d8] sm:$0xff]
    %v2295 = vld [vmem:[%s8 + $0x1e0] sm:$0xff]
    %v2296 = vld [vmem:[%s8 + $0x1e8] sm:$0xff]
    %v2297 = vld [vmem:[%s8 + $0x1f0] sm:$0xff]
    %v2298 = vld [vmem:[%s8 + $0x1f8] sm:$0xff]
    %v2299 = vld [vmem:[%s9] sm:$0x1]
    %v2301 = vlaneseq
    %v2302 = vshrl.u32 %v2301, 7
    %v2303 = vsub.s32 0, %v2302
    %v2304 = vrot.slane %v2299, %v2303
    %2306 = vmatprep.subr.mxu0 0.0
    %2307 = vmatpush1.msra.mxu0 %v2235
    %2308 = vmatprep.subr.mxu0 0.0
    %2309 = vmatpush1.msra.mxu0 %v2236
    %2310 = vmatprep.subr.mxu0 0.0
    %2311 = vmatpush1.msra.mxu0 %v2237
    %2312 = vmatprep.subr.mxu0 0.0
    %2313 = vmatpush1.msra.mxu0 %v2238
    %2314 = vmatprep.subr.mxu0 0.0
    %2315 = vmatpush1.msra.mxu0 %v2239
    %2316 = vmatprep.subr.mxu0 0.0
    %2317 = vmatpush1.msra.mxu0 %v2240
    %2318 = vmatprep.subr.mxu0 0.0
    %2319 = vmatpush1.msra.mxu0 %v2241
    %2320 = vmatprep.subr.mxu0 0.0
    %2321 = vmatpush1.msra.mxu0 %v2242
    %2322 = vmatprep.subr.mxu0 0.0
    %2323 = vmatpush1.msra.mxu0 %v2243
    %2324 = vmatprep.subr.mxu0 0.0
    %2325 = vmatpush1.msra.mxu0 %v2244
    %2326 = vmatprep.subr.mxu0 0.0
    %2327 = vmatpush1.msra.mxu0 %v2245
    %2328 = vmatprep.subr.mxu0 0.0
    %2329 = vmatpush1.msra.mxu0 %v2246
    %2330 = vmatprep.subr.mxu0 0.0
    %2331 = vmatpush1.msra.mxu0 %v2247
    %2332 = vmatprep.subr.mxu0 0.0
    %2333 = vmatpush1.msra.mxu0 %v2248
    %2334 = vmatprep.subr.mxu0 0.0
    %2335 = vmatpush1.msra.mxu0 %v2249
    %2336 = vmatprep.subr.mxu0 0.0
    %2337 = vmatpush1.msra.mxu0 %v2250
    %2338 = vmatprep.subr.mxu0 0.0
    %2339 = vmatpush1.msra.mxu0 %v2251
    %2340 = vmatprep.subr.mxu0 0.0
    %2341 = vmatpush1.msra.mxu0 %v2252
    %2342 = vmatprep.subr.mxu0 0.0
    %2343 = vmatpush1.msra.mxu0 %v2253
    %2344 = vmatprep.subr.mxu0 0.0
    %2345 = vmatpush1.msra.mxu0 %v2254
    %2346 = vmatprep.subr.mxu0 0.0
    %2347 = vmatpush1.msra.mxu0 %v2255
    %2348 = vmatprep.subr.mxu0 0.0
    %2349 = vmatpush1.msra.mxu0 %v2256
    %2350 = vmatprep.subr.mxu0 0.0
    %2351 = vmatpush1.msra.mxu0 %v2257
    %2352 = vmatprep.subr.mxu0 0.0
    %2353 = vmatpush1.msra.mxu0 %v2258
    %2354 = vmatprep.subr.mxu0 0.0
    %2355 = vmatpush1.msra.mxu0 %v2259
    %2356 = vmatprep.subr.mxu0 0.0
    %2357 = vmatpush1.msra.mxu0 %v2260
    %2358 = vmatprep.subr.mxu0 0.0
    %2359 = vmatpush1.msra.mxu0 %v2261
    %2360 = vmatprep.subr.mxu0 0.0
    %2361 = vmatpush1.msra.mxu0 %v2262
    %2362 = vmatprep.subr.mxu0 0.0
    %2363 = vmatpush1.msra.mxu0 %v2263
    %2364 = vmatprep.subr.mxu0 0.0
    %2365 = vmatpush1.msra.mxu0 %v2264
    %2366 = vmatprep.subr.mxu0 0.0
    %2367 = vmatpush1.msra.mxu0 %v2265
    %2368 = vmatprep.subr.mxu0 0.0
    %2369 = vmatpush1.msra.mxu0 %v2266
    %2370 = vmatprep.mubr.f32.mxu0 %v2232
    %2371 = vmatmul.mubr.f32.gmra.mrb[0].mxu0 %v2231
    %v2372 = vpop.f32.mrb[0].mxu0
    %v2373 = vadd.f32 %v2304, %v2372
    %v2374 = vpop.f32.mrb[0].mxu0
    %2375 = vdwg.mxu0
    %2376 = vmatprep.subr.mxu0 0.0
    %2377 = vmatpush1.msra.mxu0 %v2267
    %2378 = vmatprep.subr.mxu0 0.0
    %2379 = vmatpush1.msra.mxu0 %v2268
    %2380 = vmatprep.subr.mxu0 0.0
    %2381 = vmatpush1.msra.mxu0 %v2269
    %2382 = vmatprep.subr.mxu0 0.0
    %2383 = vmatpush1.msra.mxu0 %v2270
    %2384 = vmatprep.subr.mxu0 0.0
    %2385 = vmatpush1.msra.mxu0 %v2271
    %2386 = vmatprep.subr.mxu0 0.0
    %2387 = vmatpush1.msra.mxu0 %v2272
    %2388 = vmatprep.subr.mxu0 0.0
    %2389 = vmatpush1.msra.mxu0 %v2273
    %2390 = vmatprep.subr.mxu0 0.0
    %2391 = vmatpush1.msra.mxu0 %v2274
    %2392 = vmatprep.subr.mxu0 0.0
    %2393 = vmatpush1.msra.mxu0 %v2275
    %2394 = vmatprep.subr.mxu0 0.0
    %2395 = vmatpush1.msra.mxu0 %v2276
    %2396 = vmatprep.subr.mxu0 0.0
    %2397 = vmatpush1.msra.mxu0 %v2277
    %2398 = vmatprep.subr.mxu0 0.0
    %2399 = vmatpush1.msra.mxu0 %v2278
    %2400 = vmatprep.subr.mxu0 0.0
    %2401 = vmatpush1.msra.mxu0 %v2279
    %2402 = vmatprep.subr.mxu0 0.0
    %2403 = vmatpush1.msra.mxu0 %v2280
    %2404 = vmatprep.subr.mxu0 0.0
    %2405 = vmatpush1.msra.mxu0 %v2281
    %2406 = vmatprep.subr.mxu0 0.0
    %2407 = vmatpush1.msra.mxu0 %v2282
    %2408 = vmatprep.subr.mxu0 0.0
    %2409 = vmatpush1.msra.mxu0 %v2283
    %2410 = vmatprep.subr.mxu0 0.0
    %2411 = vmatpush1.msra.mxu0 %v2284
    %2412 = vmatprep.subr.mxu0 0.0
    %2413 = vmatpush1.msra.mxu0 %v2285
    %2414 = vmatprep.subr.mxu0 0.0
    %2415 = vmatpush1.msra.mxu0 %v2286
    %2416 = vmatprep.subr.mxu0 0.0
    %2417 = vmatpush1.msra.mxu0 %v2287
    %2418 = vmatprep.subr.mxu0 0.0
    %2419 = vmatpush1.msra.mxu0 %v2288
    %2420 = vmatprep.subr.mxu0 0.0
    %2421 = vmatpush1.msra.mxu0 %v2289
    %2422 = vmatprep.subr.mxu0 0.0
    %2423 = vmatpush1.msra.mxu0 %v2290
    %2424 = vmatprep.subr.mxu0 0.0
    %2425 = vmatpush1.msra.mxu0 %v2291
    %2426 = vmatprep.subr.mxu0 0.0
    %2427 = vmatpush1.msra.mxu0 %v2292
    %2428 = vmatprep.subr.mxu0 0.0
    %2429 = vmatpush1.msra.mxu0 %v2293
    %2430 = vmatprep.subr.mxu0 0.0
    %2431 = vmatpush1.msra.mxu0 %v2294
    %2432 = vmatprep.subr.mxu0 0.0
    %2433 = vmatpush1.msra.mxu0 %v2295
    %2434 = vmatprep.subr.mxu0 0.0
    %2435 = vmatpush1.msra.mxu0 %v2296
    %2436 = vmatprep.subr.mxu0 0.0
    %2437 = vmatpush1.msra.mxu0 %v2297
    %2438 = vmatprep.subr.mxu0 0.0
    %2439 = vmatpush1.msra.mxu0 %v2298
    %2440 = vmatprep.mubr.f32.mxu0 %v2234
    %2441 = vmatmul.mubr.f32.gmra.mrb[0].mxu0 %v2233
    %v2442 = vpop.f32.mrb[0].mxu0
    %v2443 = vadd.f32 %v2373, %v2442
    %v2444 = vpop.f32.mrb[0].mxu0
    %2445 = vdwg.mxu0
    %vm2446 = vcmask 58368
    %v2447 = vsel %vm2446, %v2443, 0.0
    %2448 = vadd.xlane.f32.xlu0 %v2447
    %v2449 = vpop.xlane.xlu0 %2448
    %v2450 = vsub.f32 %v2449, %v2443
    %v2451 = vmul.f32 %v2450, 0.16666667
    %2453 = vset.pattern.permute.xlu0 0
    %2454 = vperm.xlu0 %2453, %v2443
    %v2455 = vpop.permute.xlu0 %2454
    %v2457 = vadd.f32 %v2443, %v2455
    %2459 = vset.pattern.permute.xlu0 0
    %2460 = vperm.xlu0 %2459, %v2451
    %v2461 = vpop.permute.xlu0 %2460
    %v2463 = vsub.f32 %v2457, %v2461
    %2464 = vst.msk [vmem:[%s10] sm:$0x3] %vm2446, %v2463
    // Predicated region
    $region46: #{forward.1} parent=1 // pred_check
      _
    $region47: #{forward.1} parent=1 // pred_check_branch
      %2466 = sbr.rel (0) target = $region49
    $region48: #{forward.1} parent=1 // pred_region
      _
    $region49: #{forward.1} parent=1 // pred_fallthru
      _
    // Predicated region
    $region50: #{forward.1} parent=1 // pred_check
      _
    $region51: #{forward.1} parent=1 // pred_check_branch
      %2468 = sbr.rel (0) target = $region53
    $region52: #{forward.1} parent=1 // pred_region
      _
    $region53: #{forward.1} parent=1 // pred_fallthru
      _
    %2469 = vsyncpa [#allocation3], 1

</llo_original>
